<compile_context>
chip_gen: v6e
topology: v6e:2x2x1
jax: 0.10.0
libtpu: 0.0.40
codegen_flags: <defaults>
</compile_context>

<pallas_src>
import functools

import jax
import jax.numpy as jnp
from jax.experimental import pallas as pl
from jax.experimental.pallas import tpu as pltpu

LANE = 128      # f32 lane width
SUBLANE = 8     # f32 sublane count


def _round_up(x, m):
    return ((x + m - 1) // m) * m


def rnn_chunk_kernel(x_ref, s0_ref, w_ref, b_ref, mask_ref, out_ref, s_ref,
                     *, tt, f_out):
    """One grid step == one chunk of `tt` RNN timesteps.

    x_ref    : (tt, B, obs)      observations for this chunk
    s0_ref   : (B, C)            initial combined state slab (resident)
    w_ref    : (C, F_out)        fused weight (resident); rows hid:F_out zero
    b_ref    : (1, F_out)        fused bias (resident)
    mask_ref : (1, F_out) f32    1.0 on logit columns, 0.0 elsewhere (resident)
    out_ref  : (tt, B, F_out)    per-step slab (cols 0:hid new h, hid:hid+act
                                 log-probs, rest zero padding)
    s_ref    : VMEM (B, C) f32   combined state carried across grid steps;
                                 layout [h | logp | pad | x], C = F_out + obs
    """
    c = pl.program_id(0)
    obs = x_ref.shape[2]

    @pl.when(c == 0)
    def _():
        s_ref[...] = s0_ref[...]

    # Hoisted out of the per-step loop: mask load/compare happens once per chunk.
    is_logit = mask_ref[...] > 0.5            # (1, F_out) bool
    neg_inf = jnp.float32(-jnp.inf)
    b = b_ref[...]

    def step(i, carry):
        # Write the current observation into the trailing `obs` columns of the
        # combined state slab (lane-aligned store at col F_out; no concat).
        s_ref[:, pl.ds(f_out, obs)] = x_ref[i]
        s = s_ref[...]                                        # (B, C)

        # Single fused MXU pass: [h | logp | pad | x] @ W_full + b.
        # Zero rows of W_full kill the logp/pad columns of the state slab.
        z = (jnp.dot(s, w_ref[...], preferred_element_type=jnp.float32)
             + b)                                             # (B, F_out)

        # Masked, numerically stable log-softmax over the logit columns only.
        masked = jnp.where(is_logit, z, neg_inf)
        m = jnp.max(masked, axis=1, keepdims=True)            # XLU reduce
        e = jnp.exp(masked - m)                               # EUP; 0 off-logit
        denom = jnp.sum(e, axis=1, keepdims=True)             # XLU reduce
        logp = z - m - jnp.log(denom)                         # EUP log

        # Hidden / pad columns pass through z, logit columns become log-probs.
        slab = jnp.where(is_logit, logp, z)                   # (B, F_out)

        out_ref[i] = slab.astype(out_ref.dtype)               # lane-dense vst
        s_ref[:, pl.ds(0, f_out)] = slab                      # carry state
        return carry

    jax.lax.fori_loop(0, tt, step, 0, unroll=True)


def fuse_params(w_i2h, b_i2h, w_i2o, b_i2o, obs):
    """Build MXU/lane-friendly fused params ONCE (outside the hot path).

    Returns:
      w_full : (C, F_out)   fused weight; C = F_out + obs, F_out = hid+act
                            rounded up to a multiple of 128.  Row layout
                            matches the state slab [h | logp | pad | x]:
                            rows 0:hid = recurrent weights, rows hid:F_out =
                            zeros, rows F_out: = input weights.
      b      : (1, F_out)   fused bias (zero on padding columns)
      mask   : (1, F_out)   1.0 on logit columns (hid <= col < hid+act)
      dims   : (hid, act, F_out)
    """
    hid = w_i2h.shape[0]
    act = w_i2o.shape[0]
    F = hid + act
    F_out = max(_round_up(F, LANE), LANE)

    w_fused = jnp.concatenate([w_i2h.T, w_i2o.T], axis=1)        # (obs+hid, F)
    w_fused = jnp.pad(w_fused, ((0, 0), (0, F_out - F)))         # (obs+hid, F_out)
    wx = w_fused[:obs]                                           # (obs, F_out)
    wh = w_fused[obs:]                                           # (hid, F_out)
    w_full = jnp.concatenate(
        [wh, jnp.zeros((F_out - hid, F_out), w_fused.dtype), wx],
        axis=0)                                                  # (F_out+obs, F_out)

    b = jnp.pad(jnp.concatenate([b_i2h, b_i2o]),
                (0, F_out - F)).reshape(1, F_out)
    col = jnp.arange(F_out)
    mask = ((col >= hid) & (col < F)).astype(jnp.float32).reshape(1, F_out)
    return w_full, b, mask, (hid, act, F_out)


def rnn_agent_rollout(x_seq, h0, w_full, b_fused, mask, *, act, chunk=64):
    """Run T recurrent steps with the whole loop inside pallas_call.

    x_seq : (T, B, obs), h0 : (B, hid).
    Returns (log_probs (T, B, act), hidden_seq (T, B, hid)).
    """
    T, B, obs = x_seq.shape
    hid = h0.shape[1]
    F_out = w_full.shape[1]
    C = w_full.shape[0]                 # = F_out + obs

    # Time chunking: tt timesteps per grid step (whole T for small problems).
    tt = min(T, chunk)
    T_pad = _round_up(T, tt)
    n_chunks = T_pad // tt

    # Sublane-pad the batch; pad/trim time.  Padded rows/steps are sliced off.
    B_pad = max(_round_up(B, SUBLANE), SUBLANE)
    x_p = jnp.zeros((T_pad, B_pad, obs), jnp.float32)
    x_p = x_p.at[:T, :B].set(x_seq.astype(jnp.float32))

    # Initial combined state slab: [h0 | 0 logp | 0 pad | 0 x].
    s0 = jnp.zeros((B_pad, C), jnp.float32)
    s0 = s0.at[:B, :hid].set(h0.astype(jnp.float32))

    kernel = functools.partial(rnn_chunk_kernel, tt=tt, f_out=F_out)

    slab_seq = pl.pallas_call(
        kernel,
        out_shape=jax.ShapeDtypeStruct((T_pad, B_pad, F_out), jnp.float32),
        grid_spec=pltpu.PrefetchScalarGridSpec(
            num_scalar_prefetch=0,
            grid=(n_chunks,),
            in_specs=[
                pl.BlockSpec((tt, B_pad, obs), lambda c: (c, 0, 0)),  # x chunk
                pl.BlockSpec((B_pad, C), lambda c: (0, 0)),     # s0 (resident)
                pl.BlockSpec((C, F_out), lambda c: (0, 0)),     # W  (resident)
                pl.BlockSpec((1, F_out), lambda c: (0, 0)),     # b  (resident)
                pl.BlockSpec((1, F_out), lambda c: (0, 0)),     # mask (resident)
            ],
            out_specs=pl.BlockSpec((tt, B_pad, F_out), lambda c: (c, 0, 0)),
            scratch_shapes=[pltpu.VMEM((B_pad, C), jnp.float32)],
        ),
        compiler_params=pltpu.CompilerParams(
            dimension_semantics=("arbitrary",)),   # time axis is recurrent
    )(x_p, s0, w_full, b_fused, mask)

    hidden_seq = slab_seq[:T, :B, :hid]            # (T, B, hid)
    log_probs = slab_seq[:T, :B, hid:hid + act]    # (T, B, act)
    return log_probs, hidden_seq


def rnn_agent_forward(x, h, w_full, b_fused, mask, *, act):
    """Single-step forward matching the PyTorch module: (output, hidden).

    Note: avoid calling this in a host-side per-step loop; prefer
    rnn_agent_rollout so many timesteps run per pallas_call.
    """
    log_probs, hidden_seq = rnn_agent_rollout(
        x[None], h, w_full, b_fused, mask, act=act)
    return log_probs[0], hidden_seq[0]


def init_params(key, obs, act, hid):
    """nn.Linear-style init (uniform in +/- 1/sqrt(fan_in)), PyTorch layout."""
    fan_in = obs + hid
    bound = 1.0 / jnp.sqrt(jnp.float32(fan_in))
    k1, k2, k3, k4 = jax.random.split(key, 4)
    w_i2h = jax.random.uniform(k1, (hid, fan_in), jnp.float32, -bound, bound)
    b_i2h = jax.random.uniform(k2, (hid,), jnp.float32, -bound, bound)
    w_i2o = jax.random.uniform(k3, (act, fan_in), jnp.float32, -bound, bound)
    b_i2o = jax.random.uniform(k4, (act,), jnp.float32, -bound, bound)
    return w_i2h, b_i2h, w_i2o, b_i2o


def reference_rollout(x_seq, h0, w_i2h, b_i2h, w_i2o, b_i2o):
    """Pure-JAX reference: the PyTorch forward applied recurrently."""
    h = h0
    outs, hs = [], []
    for t in range(x_seq.shape[0]):
        combined = jnp.concatenate([x_seq[t], h], axis=1)
        new_h = combined @ w_i2h.T + b_i2h
        logits = combined @ w_i2o.T + b_i2o
        outs.append(jax.nn.log_softmax(logits, axis=1))
        h = new_h
        hs.append(h)
    return jnp.stack(outs), jnp.stack(hs)


if __name__ == "__main__":
    # Small shapes consistent with the module's forward.
    batch = 2
    observation_space_size = 16
    action_space_size = 8
    hidden_size = 32
    seq_len = 8

    key = jax.random.PRNGKey(0)
    kx, kp = jax.random.split(key, 2)

    x_seq = jax.random.normal(
        kx, (seq_len, batch, observation_space_size), jnp.float32)
    h0 = jnp.zeros((batch, hidden_size), jnp.float32)   # module's initHidden()

    w_i2h, b_i2h, w_i2o, b_i2o = init_params(
        kp, observation_space_size, action_space_size, hidden_size)

    # Hoisted once: fused, lane-padded, MXU-friendly parameters + softmax mask.
    w_full, b_fused, mask, (hid, act, F_out) = fuse_params(
        w_i2h, b_i2h, w_i2o, b_i2o, observation_space_size)

    rollout_fn = jax.jit(
        functools.partial(rnn_agent_rollout, act=action_space_size))
    step_fn = jax.jit(
        functools.partial(rnn_agent_forward, act=action_space_size))

    # Full fused rollout (all T steps in one pallas_call / one grid step).
    log_probs, hidden_seq = jax.block_until_ready(
        rollout_fn(x_seq, h0, w_full, b_fused, mask))

    # Single-step forward (matches the PyTorch module signature).
    step_out, step_h = jax.block_until_ready(
        step_fn(x_seq[0], h0, w_full, b_fused, mask))

    # Pure-JAX reference checks.
    ref_out, ref_h = reference_rollout(x_seq, h0, w_i2h, b_i2h, w_i2o, b_i2o)
    assert jnp.allclose(log_probs, ref_out, atol=1e-4, rtol=1e-4), \
        "rollout log-softmax mismatch"
    assert jnp.allclose(hidden_seq, ref_h, atol=1e-4, rtol=1e-4), \
        "rollout hidden-state mismatch"
    assert jnp.allclose(step_out, ref_out[0], atol=1e-4, rtol=1e-4), \
        "single-step output mismatch"
    assert jnp.allclose(step_h, ref_h[0], atol=1e-4, rtol=1e-4), \
        "single-step hidden mismatch"

    print("KERNEL_OK")
</pallas_src>

<mosaic_0001>
module attributes {stable_mosaic.version = 11 : i64} {
  func.func @rnn_chunk_kernel(%arg0: i32, %arg1: memref<8x8x16xf32, #tpu.memory_space<vmem>>, %arg2: memref<8x144xf32, #tpu.memory_space<vmem>>, %arg3: memref<144x128xf32, #tpu.memory_space<vmem>>, %arg4: memref<1x128xf32, #tpu.memory_space<vmem>>, %arg5: memref<1x128xf32, #tpu.memory_space<vmem>>, %arg6: memref<8x8x128xf32, #tpu.memory_space<vmem>>, %arg7: memref<8x144xf32, #tpu.memory_space<vmem>>) attributes {dimension_semantics = [#tpu.dimension_semantics<arbitrary>], iteration_bounds = array<i64: 1>, scalar_prefetch = 0 : i64, scratch_operands = 1 : i64, tpu.core_type = #tpu.core_type<tc>, window_params = [{transform_indices = @transform_0, window_bounds = array<i64: 8, 8, 16>}, {pipeline_mode = #tpu.pipeline_mode<synchronous>, transform_indices = @transform_1, window_bounds = array<i64: 8, 144>}, {pipeline_mode = #tpu.pipeline_mode<synchronous>, transform_indices = @transform_2, window_bounds = array<i64: 144, 128>}, {pipeline_mode = #tpu.pipeline_mode<synchronous>, transform_indices = @transform_3, window_bounds = array<i64: 1, 128>}, {pipeline_mode = #tpu.pipeline_mode<synchronous>, transform_indices = @transform_4, window_bounds = array<i64: 1, 128>}, {transform_indices = @transform_5, window_bounds = array<i64: 8, 8, 128>}]} {
    %c0_i32 = arith.constant 0 : i32
    %0 = arith.cmpi eq, %arg0, %c0_i32 : i32
    %1 = arith.extui %0 : i1 to i32
    %c0_i32_0 = arith.constant 0 : i32
    %2 = arith.cmpi ne, %1, %c0_i32_0 : i32
    scf.if %2 {
      %c0_125 = arith.constant 0 : index
      %c0_126 = arith.constant 0 : index
      %271 = vector.load %arg2[%c0_125, %c0_126] : memref<8x144xf32, #tpu.memory_space<vmem>>, vector<8x144xf32>
      %c0_127 = arith.constant 0 : index
      %c0_128 = arith.constant 0 : index
      %272 = vector.load %arg7[%c0_127, %c0_128] : memref<8x144xf32, #tpu.memory_space<vmem>>, vector<8x144xf32>
      tpu.vector_store %arg7[%c0_127, %c0_128], %271 {strides = array<i32>} : memref<8x144xf32, #tpu.memory_space<vmem>>, vector<8x144xf32>,
    } else {
    }
    %c0 = arith.constant 0 : index
    %c0_1 = arith.constant 0 : index
    %3 = vector.load %arg5[%c0, %c0_1] : memref<1x128xf32, #tpu.memory_space<vmem>>, vector<1x128xf32>
    %cst = arith.constant 5.000000e-01 : f32
    %4 = vector.broadcast %cst : f32 to vector<1x128xf32>
    %5 = arith.cmpf ogt, %3, %4 : vector<1x128xf32>
    %c0_2 = arith.constant 0 : index
    %c0_3 = arith.constant 0 : index
    %6 = vector.load %arg4[%c0_2, %c0_3] : memref<1x128xf32, #tpu.memory_space<vmem>>, vector<1x128xf32>
    %cst_4 = arith.constant 0xFF800000 : f32
    %c0_i32_5 = arith.constant 0 : i32
    %7 = arith.index_cast %c0_i32_5 : i32 to index
    %c0_6 = arith.constant 0 : index
    %c0_7 = arith.constant 0 : index
    %8 = vector.load %arg1[%7, %c0_6, %c0_7] : memref<8x8x16xf32, #tpu.memory_space<vmem>>, vector<1x8x16xf32>
    %9 = vector.shape_cast %8 : vector<1x8x16xf32> to vector<8x16xf32>
    %c0_8 = arith.constant 0 : index
    %c128 = arith.constant 128 : index
    %10 = vector.load %arg7[%c0_8, %c128] : memref<8x144xf32, #tpu.memory_space<vmem>>, vector<8x16xf32>
    tpu.vector_store %arg7[%c0_8, %c128], %9 {strides = array<i32>} : memref<8x144xf32, #tpu.memory_space<vmem>>, vector<8x16xf32>,
    %c0_9 = arith.constant 0 : index
    %c0_10 = arith.constant 0 : index
    %11 = vector.load %arg7[%c0_9, %c0_10] : memref<8x144xf32, #tpu.memory_space<vmem>>, vector<8x144xf32>
    %c0_11 = arith.constant 0 : index
    %c0_12 = arith.constant 0 : index
    %12 = vector.load %arg3[%c0_11, %c0_12] : memref<144x128xf32, #tpu.memory_space<vmem>>, vector<144x128xf32>
    %cst_13 = arith.constant dense<0.000000e+00> : vector<8x128xf32>
    %13 = tpu.matmul %11, %12, %cst_13 {dimension_numbers = #tpu.dot_dimension_numbers<[1], [0], [0], [1], [0, 0, 1, 1], [], []>} : vector<8x144xf32>, vector<144x128xf32>, vector<8x128xf32> -> vector<8x128xf32>
    %14 = vector.broadcast %6 : vector<1x128xf32> to vector<8x128xf32>
    %15 = arith.addf %13, %14 : vector<8x128xf32>
    %16 = vector.shape_cast %5 : vector<1x128xi1> to vector<1x128xi1>
    %17 = vector.broadcast %16 : vector<1x128xi1> to vector<8x128xi1>
    %18 = vector.broadcast %cst_4 : f32 to vector<8x128xf32>
    %19 = arith.select %17, %15, %18 : vector<8x128xi1>, vector<8x128xf32>
    %cst_14 = arith.constant dense<0xFF800000> : vector<8xf32>
    %20 = vector.multi_reduction <maximumf>, %19, %cst_14 [1] : vector<8x128xf32> to vector<8xf32>
    %21 = vector.shape_cast %20 : vector<8xf32> to vector<8x1xf32>
    %22 = vector.broadcast %21 : vector<8x1xf32> to vector<8x128xf32>
    %23 = arith.subf %19, %22 : vector<8x128xf32>
    %24 = math.exp %23 : vector<8x128xf32>
    %cst_15 = arith.constant dense<0.000000e+00> : vector<8xf32>
    %25 = vector.multi_reduction <add>, %24, %cst_15 [1] : vector<8x128xf32> to vector<8xf32>
    %26 = vector.shape_cast %25 : vector<8xf32> to vector<8x1xf32>
    %27 = vector.broadcast %21 : vector<8x1xf32> to vector<8x128xf32>
    %28 = arith.subf %15, %27 : vector<8x128xf32>
    %29 = math.log %26 : vector<8x1xf32>
    %30 = vector.broadcast %29 : vector<8x1xf32> to vector<8x128xf32>
    %31 = arith.subf %28, %30 : vector<8x128xf32>
    %32 = vector.shape_cast %5 : vector<1x128xi1> to vector<1x128xi1>
    %33 = vector.broadcast %32 : vector<1x128xi1> to vector<8x128xi1>
    %34 = arith.select %33, %31, %15 : vector<8x128xi1>, vector<8x128xf32>
    %35 = arith.index_cast %c0_i32_5 : i32 to index
    %c0_16 = arith.constant 0 : index
    %c0_17 = arith.constant 0 : index
    %36 = vector.load %arg6[%35, %c0_16, %c0_17] : memref<8x8x128xf32, #tpu.memory_space<vmem>>, vector<1x8x128xf32>
    %37 = vector.shape_cast %36 : vector<1x8x128xf32> to vector<8x128xf32>
    %38 = vector.shape_cast %34 : vector<8x128xf32> to vector<1x8x128xf32>
    tpu.vector_store %arg6[%35, %c0_16, %c0_17], %38 {strides = array<i32>} : memref<8x8x128xf32, #tpu.memory_space<vmem>>, vector<1x8x128xf32>,
    %c0_18 = arith.constant 0 : index
    %c0_19 = arith.constant 0 : index
    %39 = vector.load %arg7[%c0_18, %c0_19] : memref<8x144xf32, #tpu.memory_space<vmem>>, vector<8x128xf32>
    tpu.vector_store %arg7[%c0_18, %c0_19], %34 {strides = array<i32>} : memref<8x144xf32, #tpu.memory_space<vmem>>, vector<8x128xf32>,
    %c1_i32 = arith.constant 1 : i32
    %40 = arith.index_cast %c1_i32 : i32 to index
    %c0_20 = arith.constant 0 : index
    %c0_21 = arith.constant 0 : index
    %41 = vector.load %arg1[%40, %c0_20, %c0_21] : memref<8x8x16xf32, #tpu.memory_space<vmem>>, vector<1x8x16xf32>
    %42 = vector.shape_cast %41 : vector<1x8x16xf32> to vector<8x16xf32>
    %c0_22 = arith.constant 0 : index
    %c128_23 = arith.constant 128 : index
    %43 = vector.load %arg7[%c0_22, %c128_23] : memref<8x144xf32, #tpu.memory_space<vmem>>, vector<8x16xf32>
    tpu.vector_store %arg7[%c0_22, %c128_23], %42 {strides = array<i32>} : memref<8x144xf32, #tpu.memory_space<vmem>>, vector<8x16xf32>,
    %c0_24 = arith.constant 0 : index
    %c0_25 = arith.constant 0 : index
    %44 = vector.load %arg7[%c0_24, %c0_25] : memref<8x144xf32, #tpu.memory_space<vmem>>, vector<8x144xf32>
    %c0_26 = arith.constant 0 : index
    %c0_27 = arith.constant 0 : index
    %45 = vector.load %arg3[%c0_26, %c0_27] : memref<144x128xf32, #tpu.memory_space<vmem>>, vector<144x128xf32>
    %cst_28 = arith.constant dense<0.000000e+00> : vector<8x128xf32>
    %46 = tpu.matmul %44, %45, %cst_28 {dimension_numbers = #tpu.dot_dimension_numbers<[1], [0], [0], [1], [0, 0, 1, 1], [], []>} : vector<8x144xf32>, vector<144x128xf32>, vector<8x128xf32> -> vector<8x128xf32>
    %47 = vector.broadcast %6 : vector<1x128xf32> to vector<8x128xf32>
    %48 = arith.addf %46, %47 : vector<8x128xf32>
    %49 = vector.shape_cast %5 : vector<1x128xi1> to vector<1x128xi1>
    %50 = vector.broadcast %49 : vector<1x128xi1> to vector<8x128xi1>
    %51 = vector.broadcast %cst_4 : f32 to vector<8x128xf32>
    %52 = arith.select %50, %48, %51 : vector<8x128xi1>, vector<8x128xf32>
    %cst_29 = arith.constant dense<0xFF800000> : vector<8xf32>
    %53 = vector.multi_reduction <maximumf>, %52, %cst_29 [1] : vector<8x128xf32> to vector<8xf32>
    %54 = vector.shape_cast %53 : vector<8xf32> to vector<8x1xf32>
    %55 = vector.broadcast %54 : vector<8x1xf32> to vector<8x128xf32>
    %56 = arith.subf %52, %55 : vector<8x128xf32>
    %57 = math.exp %56 : vector<8x128xf32>
    %cst_30 = arith.constant dense<0.000000e+00> : vector<8xf32>
    %58 = vector.multi_reduction <add>, %57, %cst_30 [1] : vector<8x128xf32> to vector<8xf32>
    %59 = vector.shape_cast %58 : vector<8xf32> to vector<8x1xf32>
    %60 = vector.broadcast %54 : vector<8x1xf32> to vector<8x128xf32>
    %61 = arith.subf %48, %60 : vector<8x128xf32>
    %62 = math.log %59 : vector<8x1xf32>
    %63 = vector.broadcast %62 : vector<8x1xf32> to vector<8x128xf32>
    %64 = arith.subf %61, %63 : vector<8x128xf32>
    %65 = vector.shape_cast %5 : vector<1x128xi1> to vector<1x128xi1>
    %66 = vector.broadcast %65 : vector<1x128xi1> to vector<8x128xi1>
    %67 = arith.select %66, %64, %48 : vector<8x128xi1>, vector<8x128xf32>
    %68 = arith.index_cast %c1_i32 : i32 to index
    %c0_31 = arith.constant 0 : index
    %c0_32 = arith.constant 0 : index
    %69 = vector.load %arg6[%68, %c0_31, %c0_32] : memref<8x8x128xf32, #tpu.memory_space<vmem>>, vector<1x8x128xf32>
    %70 = vector.shape_cast %69 : vector<1x8x128xf32> to vector<8x128xf32>
    %71 = vector.shape_cast %67 : vector<8x128xf32> to vector<1x8x128xf32>
    tpu.vector_store %arg6[%68, %c0_31, %c0_32], %71 {strides = array<i32>} : memref<8x8x128xf32, #tpu.memory_space<vmem>>, vector<1x8x128xf32>,
    %c0_33 = arith.constant 0 : index
    %c0_34 = arith.constant 0 : index
    %72 = vector.load %arg7[%c0_33, %c0_34] : memref<8x144xf32, #tpu.memory_space<vmem>>, vector<8x128xf32>
    tpu.vector_store %arg7[%c0_33, %c0_34], %67 {strides = array<i32>} : memref<8x144xf32, #tpu.memory_space<vmem>>, vector<8x128xf32>,
    %c2_i32 = arith.constant 2 : i32
    %73 = arith.index_cast %c2_i32 : i32 to index
    %c0_35 = arith.constant 0 : index
    %c0_36 = arith.constant 0 : index
    %74 = vector.load %arg1[%73, %c0_35, %c0_36] : memref<8x8x16xf32, #tpu.memory_space<vmem>>, vector<1x8x16xf32>
    %75 = vector.shape_cast %74 : vector<1x8x16xf32> to vector<8x16xf32>
    %c0_37 = arith.constant 0 : index
    %c128_38 = arith.constant 128 : index
    %76 = vector.load %arg7[%c0_37, %c128_38] : memref<8x144xf32, #tpu.memory_space<vmem>>, vector<8x16xf32>
    tpu.vector_store %arg7[%c0_37, %c128_38], %75 {strides = array<i32>} : memref<8x144xf32, #tpu.memory_space<vmem>>, vector<8x16xf32>,
    %c0_39 = arith.constant 0 : index
    %c0_40 = arith.constant 0 : index
    %77 = vector.load %arg7[%c0_39, %c0_40] : memref<8x144xf32, #tpu.memory_space<vmem>>, vector<8x144xf32>
    %c0_41 = arith.constant 0 : index
    %c0_42 = arith.constant 0 : index
    %78 = vector.load %arg3[%c0_41, %c0_42] : memref<144x128xf32, #tpu.memory_space<vmem>>, vector<144x128xf32>
    %cst_43 = arith.constant dense<0.000000e+00> : vector<8x128xf32>
    %79 = tpu.matmul %77, %78, %cst_43 {dimension_numbers = #tpu.dot_dimension_numbers<[1], [0], [0], [1], [0, 0, 1, 1], [], []>} : vector<8x144xf32>, vector<144x128xf32>, vector<8x128xf32> -> vector<8x128xf32>
    %80 = vector.broadcast %6 : vector<1x128xf32> to vector<8x128xf32>
    %81 = arith.addf %79, %80 : vector<8x128xf32>
    %82 = vector.shape_cast %5 : vector<1x128xi1> to vector<1x128xi1>
    %83 = vector.broadcast %82 : vector<1x128xi1> to vector<8x128xi1>
    %84 = vector.broadcast %cst_4 : f32 to vector<8x128xf32>
    %85 = arith.select %83, %81, %84 : vector<8x128xi1>, vector<8x128xf32>
    %cst_44 = arith.constant dense<0xFF800000> : vector<8xf32>
    %86 = vector.multi_reduction <maximumf>, %85, %cst_44 [1] : vector<8x128xf32> to vector<8xf32>
    %87 = vector.shape_cast %86 : vector<8xf32> to vector<8x1xf32>
    %88 = vector.broadcast %87 : vector<8x1xf32> to vector<8x128xf32>
    %89 = arith.subf %85, %88 : vector<8x128xf32>
    %90 = math.exp %89 : vector<8x128xf32>
    %cst_45 = arith.constant dense<0.000000e+00> : vector<8xf32>
    %91 = vector.multi_reduction <add>, %90, %cst_45 [1] : vector<8x128xf32> to vector<8xf32>
    %92 = vector.shape_cast %91 : vector<8xf32> to vector<8x1xf32>
    %93 = vector.broadcast %87 : vector<8x1xf32> to vector<8x128xf32>
    %94 = arith.subf %81, %93 : vector<8x128xf32>
    %95 = math.log %92 : vector<8x1xf32>
    %96 = vector.broadcast %95 : vector<8x1xf32> to vector<8x128xf32>
    %97 = arith.subf %94, %96 : vector<8x128xf32>
    %98 = vector.shape_cast %5 : vector<1x128xi1> to vector<1x128xi1>
    %99 = vector.broadcast %98 : vector<1x128xi1> to vector<8x128xi1>
    %100 = arith.select %99, %97, %81 : vector<8x128xi1>, vector<8x128xf32>
    %101 = arith.index_cast %c2_i32 : i32 to index
    %c0_46 = arith.constant 0 : index
    %c0_47 = arith.constant 0 : index
    %102 = vector.load %arg6[%101, %c0_46, %c0_47] : memref<8x8x128xf32, #tpu.memory_space<vmem>>, vector<1x8x128xf32>
    %103 = vector.shape_cast %102 : vector<1x8x128xf32> to vector<8x128xf32>
    %104 = vector.shape_cast %100 : vector<8x128xf32> to vector<1x8x128xf32>
    tpu.vector_store %arg6[%101, %c0_46, %c0_47], %104 {strides = array<i32>} : memref<8x8x128xf32, #tpu.memory_space<vmem>>, vector<1x8x128xf32>,
    %c0_48 = arith.constant 0 : index
    %c0_49 = arith.constant 0 : index
    %105 = vector.load %arg7[%c0_48, %c0_49] : memref<8x144xf32, #tpu.memory_space<vmem>>, vector<8x128xf32>
    tpu.vector_store %arg7[%c0_48, %c0_49], %100 {strides = array<i32>} : memref<8x144xf32, #tpu.memory_space<vmem>>, vector<8x128xf32>,
    %c3_i32 = arith.constant 3 : i32
    %106 = arith.index_cast %c3_i32 : i32 to index
    %c0_50 = arith.constant 0 : index
    %c0_51 = arith.constant 0 : index
    %107 = vector.load %arg1[%106, %c0_50, %c0_51] : memref<8x8x16xf32, #tpu.memory_space<vmem>>, vector<1x8x16xf32>
    %108 = vector.shape_cast %107 : vector<1x8x16xf32> to vector<8x16xf32>
    %c0_52 = arith.constant 0 : index
    %c128_53 = arith.constant 128 : index
    %109 = vector.load %arg7[%c0_52, %c128_53] : memref<8x144xf32, #tpu.memory_space<vmem>>, vector<8x16xf32>
    tpu.vector_store %arg7[%c0_52, %c128_53], %108 {strides = array<i32>} : memref<8x144xf32, #tpu.memory_space<vmem>>, vector<8x16xf32>,
    %c0_54 = arith.constant 0 : index
    %c0_55 = arith.constant 0 : index
    %110 = vector.load %arg7[%c0_54, %c0_55] : memref<8x144xf32, #tpu.memory_space<vmem>>, vector<8x144xf32>
    %c0_56 = arith.constant 0 : index
    %c0_57 = arith.constant 0 : index
    %111 = vector.load %arg3[%c0_56, %c0_57] : memref<144x128xf32, #tpu.memory_space<vmem>>, vector<144x128xf32>
    %cst_58 = arith.constant dense<0.000000e+00> : vector<8x128xf32>
    %112 = tpu.matmul %110, %111, %cst_58 {dimension_numbers = #tpu.dot_dimension_numbers<[1], [0], [0], [1], [0, 0, 1, 1], [], []>} : vector<8x144xf32>, vector<144x128xf32>, vector<8x128xf32> -> vector<8x128xf32>
    %113 = vector.broadcast %6 : vector<1x128xf32> to vector<8x128xf32>
    %114 = arith.addf %112, %113 : vector<8x128xf32>
    %115 = vector.shape_cast %5 : vector<1x128xi1> to vector<1x128xi1>
    %116 = vector.broadcast %115 : vector<1x128xi1> to vector<8x128xi1>
    %117 = vector.broadcast %cst_4 : f32 to vector<8x128xf32>
    %118 = arith.select %116, %114, %117 : vector<8x128xi1>, vector<8x128xf32>
    %cst_59 = arith.constant dense<0xFF800000> : vector<8xf32>
    %119 = vector.multi_reduction <maximumf>, %118, %cst_59 [1] : vector<8x128xf32> to vector<8xf32>
    %120 = vector.shape_cast %119 : vector<8xf32> to vector<8x1xf32>
    %121 = vector.broadcast %120 : vector<8x1xf32> to vector<8x128xf32>
    %122 = arith.subf %118, %121 : vector<8x128xf32>
    %123 = math.exp %122 : vector<8x128xf32>
    %cst_60 = arith.constant dense<0.000000e+00> : vector<8xf32>
    %124 = vector.multi_reduction <add>, %123, %cst_60 [1] : vector<8x128xf32> to vector<8xf32>
    %125 = vector.shape_cast %124 : vector<8xf32> to vector<8x1xf32>
    %126 = vector.broadcast %120 : vector<8x1xf32> to vector<8x128xf32>
    %127 = arith.subf %114, %126 : vector<8x128xf32>
    %128 = math.log %125 : vector<8x1xf32>
    %129 = vector.broadcast %128 : vector<8x1xf32> to vector<8x128xf32>
    %130 = arith.subf %127, %129 : vector<8x128xf32>
    %131 = vector.shape_cast %5 : vector<1x128xi1> to vector<1x128xi1>
    %132 = vector.broadcast %131 : vector<1x128xi1> to vector<8x128xi1>
    %133 = arith.select %132, %130, %114 : vector<8x128xi1>, vector<8x128xf32>
    %134 = arith.index_cast %c3_i32 : i32 to index
    %c0_61 = arith.constant 0 : index
    %c0_62 = arith.constant 0 : index
    %135 = vector.load %arg6[%134, %c0_61, %c0_62] : memref<8x8x128xf32, #tpu.memory_space<vmem>>, vector<1x8x128xf32>
    %136 = vector.shape_cast %135 : vector<1x8x128xf32> to vector<8x128xf32>
    %137 = vector.shape_cast %133 : vector<8x128xf32> to vector<1x8x128xf32>
    tpu.vector_store %arg6[%134, %c0_61, %c0_62], %137 {strides = array<i32>} : memref<8x8x128xf32, #tpu.memory_space<vmem>>, vector<1x8x128xf32>,
    %c0_63 = arith.constant 0 : index
    %c0_64 = arith.constant 0 : index
    %138 = vector.load %arg7[%c0_63, %c0_64] : memref<8x144xf32, #tpu.memory_space<vmem>>, vector<8x128xf32>
    tpu.vector_store %arg7[%c0_63, %c0_64], %133 {strides = array<i32>} : memref<8x144xf32, #tpu.memory_space<vmem>>, vector<8x128xf32>,
    %c4_i32 = arith.constant 4 : i32
    %139 = arith.index_cast %c4_i32 : i32 to index
    %c0_65 = arith.constant 0 : index
    %c0_66 = arith.constant 0 : index
    %140 = vector.load %arg1[%139, %c0_65, %c0_66] : memref<8x8x16xf32, #tpu.memory_space<vmem>>, vector<1x8x16xf32>
    %141 = vector.shape_cast %140 : vector<1x8x16xf32> to vector<8x16xf32>
    %c0_67 = arith.constant 0 : index
    %c128_68 = arith.constant 128 : index
    %142 = vector.load %arg7[%c0_67, %c128_68] : memref<8x144xf32, #tpu.memory_space<vmem>>, vector<8x16xf32>
    tpu.vector_store %arg7[%c0_67, %c128_68], %141 {strides = array<i32>} : memref<8x144xf32, #tpu.memory_space<vmem>>, vector<8x16xf32>,
    %c0_69 = arith.constant 0 : index
    %c0_70 = arith.constant 0 : index
    %143 = vector.load %arg7[%c0_69, %c0_70] : memref<8x144xf32, #tpu.memory_space<vmem>>, vector<8x144xf32>
    %c0_71 = arith.constant 0 : index
    %c0_72 = arith.constant 0 : index
    %144 = vector.load %arg3[%c0_71, %c0_72] : memref<144x128xf32, #tpu.memory_space<vmem>>, vector<144x128xf32>
    %cst_73 = arith.constant dense<0.000000e+00> : vector<8x128xf32>
    %145 = tpu.matmul %143, %144, %cst_73 {dimension_numbers = #tpu.dot_dimension_numbers<[1], [0], [0], [1], [0, 0, 1, 1], [], []>} : vector<8x144xf32>, vector<144x128xf32>, vector<8x128xf32> -> vector<8x128xf32>
    %146 = vector.broadcast %6 : vector<1x128xf32> to vector<8x128xf32>
    %147 = arith.addf %145, %146 : vector<8x128xf32>
    %148 = vector.shape_cast %5 : vector<1x128xi1> to vector<1x128xi1>
    %149 = vector.broadcast %148 : vector<1x128xi1> to vector<8x128xi1>
    %150 = vector.broadcast %cst_4 : f32 to vector<8x128xf32>
    %151 = arith.select %149, %147, %150 : vector<8x128xi1>, vector<8x128xf32>
    %cst_74 = arith.constant dense<0xFF800000> : vector<8xf32>
    %152 = vector.multi_reduction <maximumf>, %151, %cst_74 [1] : vector<8x128xf32> to vector<8xf32>
    %153 = vector.shape_cast %152 : vector<8xf32> to vector<8x1xf32>
    %154 = vector.broadcast %153 : vector<8x1xf32> to vector<8x128xf32>
    %155 = arith.subf %151, %154 : vector<8x128xf32>
    %156 = math.exp %155 : vector<8x128xf32>
    %cst_75 = arith.constant dense<0.000000e+00> : vector<8xf32>
    %157 = vector.multi_reduction <add>, %156, %cst_75 [1] : vector<8x128xf32> to vector<8xf32>
    %158 = vector.shape_cast %157 : vector<8xf32> to vector<8x1xf32>
    %159 = vector.broadcast %153 : vector<8x1xf32> to vector<8x128xf32>
    %160 = arith.subf %147, %159 : vector<8x128xf32>
    %161 = math.log %158 : vector<8x1xf32>
    %162 = vector.broadcast %161 : vector<8x1xf32> to vector<8x128xf32>
    %163 = arith.subf %160, %162 : vector<8x128xf32>
    %164 = vector.shape_cast %5 : vector<1x128xi1> to vector<1x128xi1>
    %165 = vector.broadcast %164 : vector<1x128xi1> to vector<8x128xi1>
    %166 = arith.select %165, %163, %147 : vector<8x128xi1>, vector<8x128xf32>
    %167 = arith.index_cast %c4_i32 : i32 to index
    %c0_76 = arith.constant 0 : index
    %c0_77 = arith.constant 0 : index
    %168 = vector.load %arg6[%167, %c0_76, %c0_77] : memref<8x8x128xf32, #tpu.memory_space<vmem>>, vector<1x8x128xf32>
    %169 = vector.shape_cast %168 : vector<1x8x128xf32> to vector<8x128xf32>
    %170 = vector.shape_cast %166 : vector<8x128xf32> to vector<1x8x128xf32>
    tpu.vector_store %arg6[%167, %c0_76, %c0_77], %170 {strides = array<i32>} : memref<8x8x128xf32, #tpu.memory_space<vmem>>, vector<1x8x128xf32>,
    %c0_78 = arith.constant 0 : index
    %c0_79 = arith.constant 0 : index
    %171 = vector.load %arg7[%c0_78, %c0_79] : memref<8x144xf32, #tpu.memory_space<vmem>>, vector<8x128xf32>
    tpu.vector_store %arg7[%c0_78, %c0_79], %166 {strides = array<i32>} : memref<8x144xf32, #tpu.memory_space<vmem>>, vector<8x128xf32>,
    %c5_i32 = arith.constant 5 : i32
    %172 = arith.index_cast %c5_i32 : i32 to index
    %c0_80 = arith.constant 0 : index
    %c0_81 = arith.constant 0 : index
    %173 = vector.load %arg1[%172, %c0_80, %c0_81] : memref<8x8x16xf32, #tpu.memory_space<vmem>>, vector<1x8x16xf32>
    %174 = vector.shape_cast %173 : vector<1x8x16xf32> to vector<8x16xf32>
    %c0_82 = arith.constant 0 : index
    %c128_83 = arith.constant 128 : index
    %175 = vector.load %arg7[%c0_82, %c128_83] : memref<8x144xf32, #tpu.memory_space<vmem>>, vector<8x16xf32>
    tpu.vector_store %arg7[%c0_82, %c128_83], %174 {strides = array<i32>} : memref<8x144xf32, #tpu.memory_space<vmem>>, vector<8x16xf32>,
    %c0_84 = arith.constant 0 : index
    %c0_85 = arith.constant 0 : index
    %176 = vector.load %arg7[%c0_84, %c0_85] : memref<8x144xf32, #tpu.memory_space<vmem>>, vector<8x144xf32>
    %c0_86 = arith.constant 0 : index
    %c0_87 = arith.constant 0 : index
    %177 = vector.load %arg3[%c0_86, %c0_87] : memref<144x128xf32, #tpu.memory_space<vmem>>, vector<144x128xf32>
    %cst_88 = arith.constant dense<0.000000e+00> : vector<8x128xf32>
    %178 = tpu.matmul %176, %177, %cst_88 {dimension_numbers = #tpu.dot_dimension_numbers<[1], [0], [0], [1], [0, 0, 1, 1], [], []>} : vector<8x144xf32>, vector<144x128xf32>, vector<8x128xf32> -> vector<8x128xf32>
    %179 = vector.broadcast %6 : vector<1x128xf32> to vector<8x128xf32>
    %180 = arith.addf %178, %179 : vector<8x128xf32>
    %181 = vector.shape_cast %5 : vector<1x128xi1> to vector<1x128xi1>
    %182 = vector.broadcast %181 : vector<1x128xi1> to vector<8x128xi1>
    %183 = vector.broadcast %cst_4 : f32 to vector<8x128xf32>
    %184 = arith.select %182, %180, %183 : vector<8x128xi1>, vector<8x128xf32>
    %cst_89 = arith.constant dense<0xFF800000> : vector<8xf32>
    %185 = vector.multi_reduction <maximumf>, %184, %cst_89 [1] : vector<8x128xf32> to vector<8xf32>
    %186 = vector.shape_cast %185 : vector<8xf32> to vector<8x1xf32>
    %187 = vector.broadcast %186 : vector<8x1xf32> to vector<8x128xf32>
    %188 = arith.subf %184, %187 : vector<8x128xf32>
    %189 = math.exp %188 : vector<8x128xf32>
    %cst_90 = arith.constant dense<0.000000e+00> : vector<8xf32>
    %190 = vector.multi_reduction <add>, %189, %cst_90 [1] : vector<8x128xf32> to vector<8xf32>
    %191 = vector.shape_cast %190 : vector<8xf32> to vector<8x1xf32>
    %192 = vector.broadcast %186 : vector<8x1xf32> to vector<8x128xf32>
    %193 = arith.subf %180, %192 : vector<8x128xf32>
    %194 = math.log %191 : vector<8x1xf32>
    %195 = vector.broadcast %194 : vector<8x1xf32> to vector<8x128xf32>
    %196 = arith.subf %193, %195 : vector<8x128xf32>
    %197 = vector.shape_cast %5 : vector<1x128xi1> to vector<1x128xi1>
    %198 = vector.broadcast %197 : vector<1x128xi1> to vector<8x128xi1>
    %199 = arith.select %198, %196, %180 : vector<8x128xi1>, vector<8x128xf32>
    %200 = arith.index_cast %c5_i32 : i32 to index
    %c0_91 = arith.constant 0 : index
    %c0_92 = arith.constant 0 : index
    %201 = vector.load %arg6[%200, %c0_91, %c0_92] : memref<8x8x128xf32, #tpu.memory_space<vmem>>, vector<1x8x128xf32>
    %202 = vector.shape_cast %201 : vector<1x8x128xf32> to vector<8x128xf32>
    %203 = vector.shape_cast %199 : vector<8x128xf32> to vector<1x8x128xf32>
    tpu.vector_store %arg6[%200, %c0_91, %c0_92], %203 {strides = array<i32>} : memref<8x8x128xf32, #tpu.memory_space<vmem>>, vector<1x8x128xf32>,
    %c0_93 = arith.constant 0 : index
    %c0_94 = arith.constant 0 : index
    %204 = vector.load %arg7[%c0_93, %c0_94] : memref<8x144xf32, #tpu.memory_space<vmem>>, vector<8x128xf32>
    tpu.vector_store %arg7[%c0_93, %c0_94], %199 {strides = array<i32>} : memref<8x144xf32, #tpu.memory_space<vmem>>, vector<8x128xf32>,
    %c6_i32 = arith.constant 6 : i32
    %205 = arith.index_cast %c6_i32 : i32 to index
    %c0_95 = arith.constant 0 : index
    %c0_96 = arith.constant 0 : index
    %206 = vector.load %arg1[%205, %c0_95, %c0_96] : memref<8x8x16xf32, #tpu.memory_space<vmem>>, vector<1x8x16xf32>
    %207 = vector.shape_cast %206 : vector<1x8x16xf32> to vector<8x16xf32>
    %c0_97 = arith.constant 0 : index
    %c128_98 = arith.constant 128 : index
    %208 = vector.load %arg7[%c0_97, %c128_98] : memref<8x144xf32, #tpu.memory_space<vmem>>, vector<8x16xf32>
    tpu.vector_store %arg7[%c0_97, %c128_98], %207 {strides = array<i32>} : memref<8x144xf32, #tpu.memory_space<vmem>>, vector<8x16xf32>,
    %c0_99 = arith.constant 0 : index
    %c0_100 = arith.constant 0 : index
    %209 = vector.load %arg7[%c0_99, %c0_100] : memref<8x144xf32, #tpu.memory_space<vmem>>, vector<8x144xf32>
    %c0_101 = arith.constant 0 : index
    %c0_102 = arith.constant 0 : index
    %210 = vector.load %arg3[%c0_101, %c0_102] : memref<144x128xf32, #tpu.memory_space<vmem>>, vector<144x128xf32>
    %cst_103 = arith.constant dense<0.000000e+00> : vector<8x128xf32>
    %211 = tpu.matmul %209, %210, %cst_103 {dimension_numbers = #tpu.dot_dimension_numbers<[1], [0], [0], [1], [0, 0, 1, 1], [], []>} : vector<8x144xf32>, vector<144x128xf32>, vector<8x128xf32> -> vector<8x128xf32>
    %212 = vector.broadcast %6 : vector<1x128xf32> to vector<8x128xf32>
    %213 = arith.addf %211, %212 : vector<8x128xf32>
    %214 = vector.shape_cast %5 : vector<1x128xi1> to vector<1x128xi1>
    %215 = vector.broadcast %214 : vector<1x128xi1> to vector<8x128xi1>
    %216 = vector.broadcast %cst_4 : f32 to vector<8x128xf32>
    %217 = arith.select %215, %213, %216 : vector<8x128xi1>, vector<8x128xf32>
    %cst_104 = arith.constant dense<0xFF800000> : vector<8xf32>
    %218 = vector.multi_reduction <maximumf>, %217, %cst_104 [1] : vector<8x128xf32> to vector<8xf32>
    %219 = vector.shape_cast %218 : vector<8xf32> to vector<8x1xf32>
    %220 = vector.broadcast %219 : vector<8x1xf32> to vector<8x128xf32>
    %221 = arith.subf %217, %220 : vector<8x128xf32>
    %222 = math.exp %221 : vector<8x128xf32>
    %cst_105 = arith.constant dense<0.000000e+00> : vector<8xf32>
    %223 = vector.multi_reduction <add>, %222, %cst_105 [1] : vector<8x128xf32> to vector<8xf32>
    %224 = vector.shape_cast %223 : vector<8xf32> to vector<8x1xf32>
    %225 = vector.broadcast %219 : vector<8x1xf32> to vector<8x128xf32>
    %226 = arith.subf %213, %225 : vector<8x128xf32>
    %227 = math.log %224 : vector<8x1xf32>
    %228 = vector.broadcast %227 : vector<8x1xf32> to vector<8x128xf32>
    %229 = arith.subf %226, %228 : vector<8x128xf32>
    %230 = vector.shape_cast %5 : vector<1x128xi1> to vector<1x128xi1>
    %231 = vector.broadcast %230 : vector<1x128xi1> to vector<8x128xi1>
    %232 = arith.select %231, %229, %213 : vector<8x128xi1>, vector<8x128xf32>
    %233 = arith.index_cast %c6_i32 : i32 to index
    %c0_106 = arith.constant 0 : index
    %c0_107 = arith.constant 0 : index
    %234 = vector.load %arg6[%233, %c0_106, %c0_107] : memref<8x8x128xf32, #tpu.memory_space<vmem>>, vector<1x8x128xf32>
    %235 = vector.shape_cast %234 : vector<1x8x128xf32> to vector<8x128xf32>
    %236 = vector.shape_cast %232 : vector<8x128xf32> to vector<1x8x128xf32>
    tpu.vector_store %arg6[%233, %c0_106, %c0_107], %236 {strides = array<i32>} : memref<8x8x128xf32, #tpu.memory_space<vmem>>, vector<1x8x128xf32>,
    %c0_108 = arith.constant 0 : index
    %c0_109 = arith.constant 0 : index
    %237 = vector.load %arg7[%c0_108, %c0_109] : memref<8x144xf32, #tpu.memory_space<vmem>>, vector<8x128xf32>
    tpu.vector_store %arg7[%c0_108, %c0_109], %232 {strides = array<i32>} : memref<8x144xf32, #tpu.memory_space<vmem>>, vector<8x128xf32>,
    %c7_i32 = arith.constant 7 : i32
    %238 = arith.index_cast %c7_i32 : i32 to index
    %c0_110 = arith.constant 0 : index
    %c0_111 = arith.constant 0 : index
    %239 = vector.load %arg1[%238, %c0_110, %c0_111] : memref<8x8x16xf32, #tpu.memory_space<vmem>>, vector<1x8x16xf32>
    %240 = vector.shape_cast %239 : vector<1x8x16xf32> to vector<8x16xf32>
    %c0_112 = arith.constant 0 : index
    %c128_113 = arith.constant 128 : index
    %241 = vector.load %arg7[%c0_112, %c128_113] : memref<8x144xf32, #tpu.memory_space<vmem>>, vector<8x16xf32>
    tpu.vector_store %arg7[%c0_112, %c128_113], %240 {strides = array<i32>} : memref<8x144xf32, #tpu.memory_space<vmem>>, vector<8x16xf32>,
    %c0_114 = arith.constant 0 : index
    %c0_115 = arith.constant 0 : index
    %242 = vector.load %arg7[%c0_114, %c0_115] : memref<8x144xf32, #tpu.memory_space<vmem>>, vector<8x144xf32>
    %c0_116 = arith.constant 0 : index
    %c0_117 = arith.constant 0 : index
    %243 = vector.load %arg3[%c0_116, %c0_117] : memref<144x128xf32, #tpu.memory_space<vmem>>, vector<144x128xf32>
    %cst_118 = arith.constant dense<0.000000e+00> : vector<8x128xf32>
    %244 = tpu.matmul %242, %243, %cst_118 {dimension_numbers = #tpu.dot_dimension_numbers<[1], [0], [0], [1], [0, 0, 1, 1], [], []>} : vector<8x144xf32>, vector<144x128xf32>, vector<8x128xf32> -> vector<8x128xf32>
    %245 = vector.broadcast %6 : vector<1x128xf32> to vector<8x128xf32>
    %246 = arith.addf %244, %245 : vector<8x128xf32>
    %247 = vector.shape_cast %5 : vector<1x128xi1> to vector<1x128xi1>
    %248 = vector.broadcast %247 : vector<1x128xi1> to vector<8x128xi1>
    %249 = vector.broadcast %cst_4 : f32 to vector<8x128xf32>
    %250 = arith.select %248, %246, %249 : vector<8x128xi1>, vector<8x128xf32>
    %cst_119 = arith.constant dense<0xFF800000> : vector<8xf32>
    %251 = vector.multi_reduction <maximumf>, %250, %cst_119 [1] : vector<8x128xf32> to vector<8xf32>
    %252 = vector.shape_cast %251 : vector<8xf32> to vector<8x1xf32>
    %253 = vector.broadcast %252 : vector<8x1xf32> to vector<8x128xf32>
    %254 = arith.subf %250, %253 : vector<8x128xf32>
    %255 = math.exp %254 : vector<8x128xf32>
    %cst_120 = arith.constant dense<0.000000e+00> : vector<8xf32>
    %256 = vector.multi_reduction <add>, %255, %cst_120 [1] : vector<8x128xf32> to vector<8xf32>
    %257 = vector.shape_cast %256 : vector<8xf32> to vector<8x1xf32>
    %258 = vector.broadcast %252 : vector<8x1xf32> to vector<8x128xf32>
    %259 = arith.subf %246, %258 : vector<8x128xf32>
    %260 = math.log %257 : vector<8x1xf32>
    %261 = vector.broadcast %260 : vector<8x1xf32> to vector<8x128xf32>
    %262 = arith.subf %259, %261 : vector<8x128xf32>
    %263 = vector.shape_cast %5 : vector<1x128xi1> to vector<1x128xi1>
    %264 = vector.broadcast %263 : vector<1x128xi1> to vector<8x128xi1>
    %265 = arith.select %264, %262, %246 : vector<8x128xi1>, vector<8x128xf32>
    %266 = arith.index_cast %c7_i32 : i32 to index
    %c0_121 = arith.constant 0 : index
    %c0_122 = arith.constant 0 : index
    %267 = vector.load %arg6[%266, %c0_121, %c0_122] : memref<8x8x128xf32, #tpu.memory_space<vmem>>, vector<1x8x128xf32>
    %268 = vector.shape_cast %267 : vector<1x8x128xf32> to vector<8x128xf32>
    %269 = vector.shape_cast %265 : vector<8x128xf32> to vector<1x8x128xf32>
    tpu.vector_store %arg6[%266, %c0_121, %c0_122], %269 {strides = array<i32>} : memref<8x8x128xf32, #tpu.memory_space<vmem>>, vector<1x8x128xf32>,
    %c0_123 = arith.constant 0 : index
    %c0_124 = arith.constant 0 : index
    %270 = vector.load %arg7[%c0_123, %c0_124] : memref<8x144xf32, #tpu.memory_space<vmem>>, vector<8x128xf32>
    tpu.vector_store %arg7[%c0_123, %c0_124], %265 {strides = array<i32>} : memref<8x144xf32, #tpu.memory_space<vmem>>, vector<8x128xf32>,
    %c8_i32 = arith.constant 8 : i32
    return
  }
  func.func @transform_0(%arg0: i32) -> (i32, i32, i32) {
    %c0_i32 = arith.constant 0 : i32
    %c0_i32_0 = arith.constant 0 : i32
    %c0_i32_1 = arith.constant 0 : i32
    return %arg0, %c0_i32, %c0_i32_0 : i32, i32, i32
  }
  func.func @transform_1(%arg0: i32) -> (i32, i32) {
    %c0_i32 = arith.constant 0 : i32
    %c0_i32_0 = arith.constant 0 : i32
    %c0_i32_1 = arith.constant 0 : i32
    return %c0_i32, %c0_i32_0 : i32, i32
  }
  func.func @transform_2(%arg0: i32) -> (i32, i32) {
    %c0_i32 = arith.constant 0 : i32
    %c0_i32_0 = arith.constant 0 : i32
    %c0_i32_1 = arith.constant 0 : i32
    return %c0_i32, %c0_i32_0 : i32, i32
  }
  func.func @transform_3(%arg0: i32) -> (i32, i32) {
    %c0_i32 = arith.constant 0 : i32
    %c0_i32_0 = arith.constant 0 : i32
    %c0_i32_1 = arith.constant 0 : i32
    return %c0_i32, %c0_i32_0 : i32, i32
  }
  func.func @transform_4(%arg0: i32) -> (i32, i32) {
    %c0_i32 = arith.constant 0 : i32
    %c0_i32_0 = arith.constant 0 : i32
    %c0_i32_1 = arith.constant 0 : i32
    return %c0_i32, %c0_i32_0 : i32, i32
  }
  func.func @transform_5(%arg0: i32) -> (i32, i32, i32) {
    %c0_i32 = arith.constant 0 : i32
    %c0_i32_0 = arith.constant 0 : i32
    %c0_i32_1 = arith.constant 0 : i32
    return %arg0, %c0_i32, %c0_i32_0 : i32, i32, i32
  }
}

</mosaic_0001>

<llo_original>
// kernel: rnn_agent_rollout.1
$region0: #{rnn_agent_rollout.1}
  #allocation0 [shape = 'u32[]', space=smem, size = 0x4, offset = 0x4, fixed_abs, tag = 'smem constant byte address 0x4 - core index']
  #allocation1 [shape = 'u32[144,128]{1,0:T(1,128)}', space=vmem, size = 0x12000, scoped, tag = 'internal scratch']
  #allocation2 [shape = 'f32[8,144]{1,0:T(8,128)}', space=vmem, size = 0x2000, scoped, tag = 'scratch operand']
  %s0 = inlined_call_operand.vmem [shape: f32[8,8,16], index: 0, kind: input, shape index: {}]
  %s1 = inlined_call_operand.vmem [shape: f32[8,144], index: 1, kind: input, shape index: {}]
  %s2 = inlined_call_operand.hbm [shape: f32[144,128], index: 2, kind: input, shape index: {}]
  %s3 = inlined_call_operand.vmem [shape: f32[1,128], index: 3, kind: input, shape index: {}]
  %s4 = inlined_call_operand.vmem [shape: f32[1,128], index: 4, kind: input, shape index: {}]
  %s5 = inlined_call_operand.vmem [shape: f32[8,8,128], index: 5, kind: output, shape index: {}]
  %s6 = sld [smem:[#allocation0]]
  $region38: #{rnn_agent_rollout.1} parent=0
    _
  %s8 = ssub.s32 1, %s6
  %s9 = scalar_select 0, %s8, %s6
  $region1: #{rnn_agent_rollout.1} parent=0
    #allocation3 [shape = 'u8[73728]{0}', space=vmem, size = 0x12000, scoped, tag = 'input window, operand 2, single buffered']
    #allocation4 [shape = 's32[1]{0}', space=sflag, size = 0x4, scoped, tag = 'scoped memory for rnn_agent_rollout.1']
    %10 = vsyncpa [#allocation4], 0
    // Predicated region
    $region2: #{rnn_agent_rollout.1} parent=1 // pred_check
      _
    $region3: #{rnn_agent_rollout.1} parent=1 // pred_check_branch
      %12 = sbr.rel (0) target = $region5
    $region4: #{rnn_agent_rollout.1} parent=1 // pred_region
      _
    $region5: #{rnn_agent_rollout.1} parent=1 // pred_fallthru
      _
    // Predicated region
    $region6: #{rnn_agent_rollout.1} parent=1 // pred_check
      _
    $region7: #{rnn_agent_rollout.1} parent=1 // pred_check_branch
      %14 = sbr.rel (0) target = $region9
    $region8: #{rnn_agent_rollout.1} parent=1 // pred_region
      _
    $region9: #{rnn_agent_rollout.1} parent=1 // pred_fallthru
      _
    // Predicated region
    $region10: #{rnn_agent_rollout.1} parent=1 // pred_check
      _
    $region11: #{rnn_agent_rollout.1} parent=1 // pred_check_branch
      %16 = sbr.rel (0) target = $region13
    $region12: #{rnn_agent_rollout.1} parent=1 // pred_region
      %s18 = ssub.s32 2304, 2304
      %19 = vsyncadd [#allocation4], %s18
      %s20 = sshll.u32 [#allocation3], 4
      %s21 = int_to_ptr.vmem [resolvable:$true] %s20
      %26 = dma.hbm_to_vmem [thread:$0]  %s2, 2304, %s21, [#allocation4], 128, 128, 8
    $region13: #{rnn_agent_rollout.1} parent=1 // pred_fallthru
      _
    // Predicated region
    $region14: #{rnn_agent_rollout.1} parent=1 // pred_check
      _
    $region15: #{rnn_agent_rollout.1} parent=1 // pred_check_branch
      %28 = sbr.rel (0) target = $region17
    $region16: #{rnn_agent_rollout.1} parent=1 // pred_region
      _
    $region17: #{rnn_agent_rollout.1} parent=1 // pred_fallthru
      _
    // Predicated region
    $region18: #{rnn_agent_rollout.1} parent=1 // pred_check
      _
    $region19: #{rnn_agent_rollout.1} parent=1 // pred_check_branch
      %30 = sbr.rel (0) target = $region21
    $region20: #{rnn_agent_rollout.1} parent=1 // pred_region
      _
    $region21: #{rnn_agent_rollout.1} parent=1 // pred_fallthru
      _
    // Predicated region
    $region22: #{rnn_agent_rollout.1} parent=1 // pred_check
      _
    $region23: #{rnn_agent_rollout.1} parent=1 // pred_check_branch
      %32 = sbr.rel (0) target = $region25
    $region24: #{rnn_agent_rollout.1} parent=1 // pred_region
      %33 = dma.done [#allocation4], 2304
    $region25: #{rnn_agent_rollout.1} parent=1 // pred_fallthru
      _
    %p34 = scmp.eq.s32.totalorder 0, 0
    // Predicated region
    $region26: #{rnn_agent_rollout.1} parent=1 // pred_check
      %p35 = pneg %p34
    $region27: #{rnn_agent_rollout.1} parent=1 // pred_check_branch
      %37 = sbr.rel (%p35) target = $region29
    $region28: #{rnn_agent_rollout.1} parent=1 // pred_region
      %v38 = vld [vmem:[%s1] sm:$0xff]
      %v39 = vld [vmem:[%s1 + $0x8] sm:$0xff]
      %40 = vst [vmem:[#allocation2] sm:$0xff] %v38
      %vm41 = vcmask 130048
      %42 = vst.msk [vmem:[#allocation2 + $0x8] sm:$0xff] %vm41, %v39
    $region29: #{rnn_agent_rollout.1} parent=1 // pred_fallthru
      _
    %v43 = vld [vmem:[%s4] sm:$0x1]
    %vm44 = vcmp.gt.f32.partialorder %v43, 0.5
    %v45 = vld [vmem:[%s3] sm:$0x1]
    %v46 = vld [vmem:[%s0] sm:$0xff]
    %vm47 = vcmask 130048
    %48 = vst.msk [vmem:[#allocation2 + $0x8] sm:$0xff] %vm47, %v46
    %v49 = vld [vmem:[#allocation2] sm:$0xff]
    %v50 = vld [vmem:[#allocation2 + $0x8] sm:$0xff]
    %v51 = vld [vmem:[#allocation3] sm:$0xff]
    %v52 = vld [vmem:[#allocation3 + $0x8] sm:$0xff]
    %v53 = vld [vmem:[#allocation3 + $0x10] sm:$0xff]
    %v54 = vld [vmem:[#allocation3 + $0x18] sm:$0xff]
    %v55 = vld [vmem:[#allocation3 + $0x20] sm:$0xff]
    %v56 = vld [vmem:[#allocation3 + $0x28] sm:$0xff]
    %v57 = vld [vmem:[#allocation3 + $0x30] sm:$0xff]
    %v58 = vld [vmem:[#allocation3 + $0x38] sm:$0xff]
    %v59 = vld [vmem:[#allocation3 + $0x40] sm:$0xff]
    %v60 = vld [vmem:[#allocation3 + $0x48] sm:$0xff]
    %v61 = vld [vmem:[#allocation3 + $0x50] sm:$0xff]
    %v62 = vld [vmem:[#allocation3 + $0x58] sm:$0xff]
    %v63 = vld [vmem:[#allocation3 + $0x60] sm:$0xff]
    %v64 = vld [vmem:[#allocation3 + $0x68] sm:$0xff]
    %v65 = vld [vmem:[#allocation3 + $0x70] sm:$0xff]
    %v66 = vld [vmem:[#allocation3 + $0x78] sm:$0xff]
    %v67 = vld [vmem:[#allocation3 + $0x80] sm:$0xff]
    %v68 = vld [vmem:[#allocation3 + $0x88] sm:$0xff]
    %v70 = vlaneseq
    %v71 = vshrl.u32 %v70, 7
    %v72 = vsub.s32 0, %v71
    %v73 = vrot.slane %v45, %v72
    %v76 = vsel %vm47, %v50, 0
    %78 = vmatprep.subr.mxu0 0.0
    %79 = vmatpush1.msra.mxu0 %v66
    %80 = vmatprep.subr.mxu0 0.0
    %81 = vmatpush1.msra.mxu0 %v65
    %82 = vmatprep.subr.mxu0 0.0
    %83 = vmatpush1.msra.mxu0 %v64
    %84 = vmatprep.subr.mxu0 0.0
    %85 = vmatpush1.msra.mxu0 %v63
    %86 = vmatprep.subr.mxu0 0.0
    %87 = vmatpush1.msra.mxu0 %v62
    %88 = vmatprep.subr.mxu0 0.0
    %89 = vmatpush1.msra.mxu0 %v61
    %90 = vmatprep.subr.mxu0 0.0
    %91 = vmatpush1.msra.mxu0 %v60
    %92 = vmatprep.subr.mxu0 0.0
    %93 = vmatpush1.msra.mxu0 %v59
    %94 = vmatprep.subr.mxu0 0.0
    %95 = vmatpush1.msra.mxu0 %v58
    %96 = vmatprep.subr.mxu0 0.0
    %97 = vmatpush1.msra.mxu0 %v57
    %98 = vmatprep.subr.mxu0 0.0
    %99 = vmatpush1.msra.mxu0 %v56
    %100 = vmatprep.subr.mxu0 0.0
    %101 = vmatpush1.msra.mxu0 %v55
    %102 = vmatprep.subr.mxu0 0.0
    %103 = vmatpush1.msra.mxu0 %v54
    %104 = vmatprep.subr.mxu0 0.0
    %105 = vmatpush1.msra.mxu0 %v53
    %106 = vmatprep.subr.mxu0 0.0
    %107 = vmatpush1.msra.mxu0 %v52
    %108 = vmatprep.subr.mxu0 0.0
    %109 = vmatpush1.msra.mxu0 %v51
    %110 = vmatprep.subr.mxu0 0.0
    %111 = vmatpush2.msra.mxu0 0.0
    %112 = vmatprep.subr.mxu0 0.0
    %113 = vmatpush2.msra.mxu0 0.0
    %114 = vmatprep.subr.mxu0 0.0
    %115 = vmatpush2.msra.mxu0 0.0
    %116 = vmatprep.subr.mxu0 0.0
    %117 = vmatpush2.msra.mxu0 0.0
    %118 = vmatprep.subr.mxu0 0.0
    %119 = vmatpush2.msra.mxu0 0.0
    %120 = vmatprep.subr.mxu0 0.0
    %121 = vmatpush2.msra.mxu0 0.0
    %122 = vmatprep.subr.mxu0 0.0
    %123 = vmatpush2.msra.mxu0 0.0
    %124 = vmatprep.subr.mxu0 0.0
    %125 = vmatpush2.msra.mxu0 0.0
    %126 = vmatprep.subr.mxu0 0.0
    %127 = vmatpush2.msra.mxu0 0.0
    %128 = vmatprep.subr.mxu0 0.0
    %129 = vmatpush2.msra.mxu0 0.0
    %130 = vmatprep.subr.mxu0 0.0
    %131 = vmatpush2.msra.mxu0 0.0
    %132 = vmatprep.subr.mxu0 0.0
    %133 = vmatpush2.msra.mxu0 0.0
    %134 = vmatprep.subr.mxu0 0.0
    %135 = vmatpush2.msra.mxu0 0.0
    %136 = vmatprep.subr.mxu0 0.0
    %137 = vmatpush2.msra.mxu0 0.0
    %138 = vmatprep.subr.mxu0 0.0
    %139 = vmatpush2.msra.mxu0 %v68
    %140 = vmatprep.subr.mxu0 0.0
    %141 = vmatpush2.msra.mxu0 %v67
    %142 = vmatprep.mubr.f32.mxu0 %v76
    %143 = vmatmul.mubr.f32.gmra.mxu0 %v49
    %v144 = vpop.f32.mrf.mxu0
    %v145 = vadd.f32 %v73, %v144
    %v146 = vpop.f32.mrf.mxu0
    %147 = vdwg.mxu0
    %v148 = vsel %vm44, 1, 0
    %v149 = vlaneseq
    %v150 = vshrl.u32 %v149, 7
    %v151 = vsub.s32 0, %v150
    %v152 = vrot.slane %v148, %v151
    %vm153 = vcmp.eq.s32.totalorder %v152, 1
    %v154 = vsel %vm153, %v145, -inf
    %155 = vmax.xlane.f32.xlu0 %v154
    %v156 = vpop.xlane.xlu0 %155
    %v157 = vsub.f32 %v154, %v156
    %v158 = vmul.f32 %v157, 1.442695
    %v159 = vpow.pop %v158
    %160 = vadd.xlane.f32.xlu0 %v159
    %v161 = vpop.xlane.xlu0 %160
    %v162 = vsub.f32 %v145, %v156
    %v163 = vlog2.pop %v161
    %v164 = vmul.f32 %v163, 0.6931472
    %v165 = vsub.f32 %v162, %v164
    %v166 = vsel %vm153, %v165, %v145
    %167 = vst [vmem:[%s5] sm:$0xff] %v166
    %168 = vst [vmem:[#allocation2] sm:$0xff] %v166
    %s169 = scalar_lea.vmem %s0, 8
    %v170 = vld [vmem:[%s169] sm:$0xff]
    %171 = vst.msk [vmem:[#allocation2 + $0x8] sm:$0xff] %vm47, %v170
    %v172 = vld [vmem:[#allocation2] sm:$0xff]
    %v173 = vld [vmem:[#allocation2 + $0x8] sm:$0xff]
    %v174 = vld [vmem:[#allocation3] sm:$0xff]
    %v175 = vld [vmem:[#allocation3 + $0x8] sm:$0xff]
    %v176 = vld [vmem:[#allocation3 + $0x10] sm:$0xff]
    %v177 = vld [vmem:[#allocation3 + $0x18] sm:$0xff]
    %v178 = vld [vmem:[#allocation3 + $0x20] sm:$0xff]
    %v179 = vld [vmem:[#allocation3 + $0x28] sm:$0xff]
    %v180 = vld [vmem:[#allocation3 + $0x30] sm:$0xff]
    %v181 = vld [vmem:[#allocation3 + $0x38] sm:$0xff]
    %v182 = vld [vmem:[#allocation3 + $0x40] sm:$0xff]
    %v183 = vld [vmem:[#allocation3 + $0x48] sm:$0xff]
    %v184 = vld [vmem:[#allocation3 + $0x50] sm:$0xff]
    %v185 = vld [vmem:[#allocation3 + $0x58] sm:$0xff]
    %v186 = vld [vmem:[#allocation3 + $0x60] sm:$0xff]
    %v187 = vld [vmem:[#allocation3 + $0x68] sm:$0xff]
    %v188 = vld [vmem:[#allocation3 + $0x70] sm:$0xff]
    %v189 = vld [vmem:[#allocation3 + $0x78] sm:$0xff]
    %v190 = vld [vmem:[#allocation3 + $0x80] sm:$0xff]
    %v191 = vld [vmem:[#allocation3 + $0x88] sm:$0xff]
    %v193 = vsel %vm47, %v173, 0
    %195 = vmatprep.subr.mxu0 0.0
    %196 = vmatpush1.msra.mxu0 %v189
    %197 = vmatprep.subr.mxu0 0.0
    %198 = vmatpush1.msra.mxu0 %v188
    %199 = vmatprep.subr.mxu0 0.0
    %200 = vmatpush1.msra.mxu0 %v187
    %201 = vmatprep.subr.mxu0 0.0
    %202 = vmatpush1.msra.mxu0 %v186
    %203 = vmatprep.subr.mxu0 0.0
    %204 = vmatpush1.msra.mxu0 %v185
    %205 = vmatprep.subr.mxu0 0.0
    %206 = vmatpush1.msra.mxu0 %v184
    %207 = vmatprep.subr.mxu0 0.0
    %208 = vmatpush1.msra.mxu0 %v183
    %209 = vmatprep.subr.mxu0 0.0
    %210 = vmatpush1.msra.mxu0 %v182
    %211 = vmatprep.subr.mxu0 0.0
    %212 = vmatpush1.msra.mxu0 %v181
    %213 = vmatprep.subr.mxu0 0.0
    %214 = vmatpush1.msra.mxu0 %v180
    %215 = vmatprep.subr.mxu0 0.0
    %216 = vmatpush1.msra.mxu0 %v179
    %217 = vmatprep.subr.mxu0 0.0
    %218 = vmatpush1.msra.mxu0 %v178
    %219 = vmatprep.subr.mxu0 0.0
    %220 = vmatpush1.msra.mxu0 %v177
    %221 = vmatprep.subr.mxu0 0.0
    %222 = vmatpush1.msra.mxu0 %v176
    %223 = vmatprep.subr.mxu0 0.0
    %224 = vmatpush1.msra.mxu0 %v175
    %225 = vmatprep.subr.mxu0 0.0
    %226 = vmatpush1.msra.mxu0 %v174
    %227 = vmatprep.subr.mxu0 0.0
    %228 = vmatpush2.msra.mxu0 0.0
    %229 = vmatprep.subr.mxu0 0.0
    %230 = vmatpush2.msra.mxu0 0.0
    %231 = vmatprep.subr.mxu0 0.0
    %232 = vmatpush2.msra.mxu0 0.0
    %233 = vmatprep.subr.mxu0 0.0
    %234 = vmatpush2.msra.mxu0 0.0
    %235 = vmatprep.subr.mxu0 0.0
    %236 = vmatpush2.msra.mxu0 0.0
    %237 = vmatprep.subr.mxu0 0.0
    %238 = vmatpush2.msra.mxu0 0.0
    %239 = vmatprep.subr.mxu0 0.0
    %240 = vmatpush2.msra.mxu0 0.0
    %241 = vmatprep.subr.mxu0 0.0
    %242 = vmatpush2.msra.mxu0 0.0
    %243 = vmatprep.subr.mxu0 0.0
    %244 = vmatpush2.msra.mxu0 0.0
    %245 = vmatprep.subr.mxu0 0.0
    %246 = vmatpush2.msra.mxu0 0.0
    %247 = vmatprep.subr.mxu0 0.0
    %248 = vmatpush2.msra.mxu0 0.0
    %249 = vmatprep.subr.mxu0 0.0
    %250 = vmatpush2.msra.mxu0 0.0
    %251 = vmatprep.subr.mxu0 0.0
    %252 = vmatpush2.msra.mxu0 0.0
    %253 = vmatprep.subr.mxu0 0.0
    %254 = vmatpush2.msra.mxu0 0.0
    %255 = vmatprep.subr.mxu0 0.0
    %256 = vmatpush2.msra.mxu0 %v191
    %257 = vmatprep.subr.mxu0 0.0
    %258 = vmatpush2.msra.mxu0 %v190
    %259 = vmatprep.mubr.f32.mxu0 %v193
    %260 = vmatmul.mubr.f32.gmra.mxu0 %v172
    %v261 = vpop.f32.mrf.mxu0
    %v262 = vadd.f32 %v73, %v261
    %v263 = vpop.f32.mrf.mxu0
    %264 = vdwg.mxu0
    %v265 = vsel %vm153, %v262, -inf
    %266 = vmax.xlane.f32.xlu0 %v265
    %v267 = vpop.xlane.xlu0 %266
    %v268 = vsub.f32 %v265, %v267
    %v269 = vmul.f32 %v268, 1.442695
    %v270 = vpow.pop %v269
    %271 = vadd.xlane.f32.xlu0 %v270
    %v272 = vpop.xlane.xlu0 %271
    %v273 = vsub.f32 %v262, %v267
    %v274 = vlog2.pop %v272
    %v275 = vmul.f32 %v274, 0.6931472
    %v276 = vsub.f32 %v273, %v275
    %v277 = vsel %vm153, %v276, %v262
    %s278 = scalar_lea.vmem %s5, 8
    %279 = vst [vmem:[%s278] sm:$0xff] %v277
    %280 = vst [vmem:[#allocation2] sm:$0xff] %v277
    %s281 = scalar_lea.vmem %s0, 16
    %v282 = vld [vmem:[%s281] sm:$0xff]
    %283 = vst.msk [vmem:[#allocation2 + $0x8] sm:$0xff] %vm47, %v282
    %v284 = vld [vmem:[#allocation2] sm:$0xff]
    %v285 = vld [vmem:[#allocation2 + $0x8] sm:$0xff]
    %v286 = vld [vmem:[#allocation3] sm:$0xff]
    %v287 = vld [vmem:[#allocation3 + $0x8] sm:$0xff]
    %v288 = vld [vmem:[#allocation3 + $0x10] sm:$0xff]
    %v289 = vld [vmem:[#allocation3 + $0x18] sm:$0xff]
    %v290 = vld [vmem:[#allocation3 + $0x20] sm:$0xff]
    %v291 = vld [vmem:[#allocation3 + $0x28] sm:$0xff]
    %v292 = vld [vmem:[#allocation3 + $0x30] sm:$0xff]
    %v293 = vld [vmem:[#allocation3 + $0x38] sm:$0xff]
    %v294 = vld [vmem:[#allocation3 + $0x40] sm:$0xff]
    %v295 = vld [vmem:[#allocation3 + $0x48] sm:$0xff]
    %v296 = vld [vmem:[#allocation3 + $0x50] sm:$0xff]
    %v297 = vld [vmem:[#allocation3 + $0x58] sm:$0xff]
    %v298 = vld [vmem:[#allocation3 + $0x60] sm:$0xff]
    %v299 = vld [vmem:[#allocation3 + $0x68] sm:$0xff]
    %v300 = vld [vmem:[#allocation3 + $0x70] sm:$0xff]
    %v301 = vld [vmem:[#allocation3 + $0x78] sm:$0xff]
    %v302 = vld [vmem:[#allocation3 + $0x80] sm:$0xff]
    %v303 = vld [vmem:[#allocation3 + $0x88] sm:$0xff]
    %v305 = vsel %vm47, %v285, 0
    %307 = vmatprep.subr.mxu0 0.0
    %308 = vmatpush1.msra.mxu0 %v301
    %309 = vmatprep.subr.mxu0 0.0
    %310 = vmatpush1.msra.mxu0 %v300
    %311 = vmatprep.subr.mxu0 0.0
    %312 = vmatpush1.msra.mxu0 %v299
    %313 = vmatprep.subr.mxu0 0.0
    %314 = vmatpush1.msra.mxu0 %v298
    %315 = vmatprep.subr.mxu0 0.0
    %316 = vmatpush1.msra.mxu0 %v297
    %317 = vmatprep.subr.mxu0 0.0
    %318 = vmatpush1.msra.mxu0 %v296
    %319 = vmatprep.subr.mxu0 0.0
    %320 = vmatpush1.msra.mxu0 %v295
    %321 = vmatprep.subr.mxu0 0.0
    %322 = vmatpush1.msra.mxu0 %v294
    %323 = vmatprep.subr.mxu0 0.0
    %324 = vmatpush1.msra.mxu0 %v293
    %325 = vmatprep.subr.mxu0 0.0
    %326 = vmatpush1.msra.mxu0 %v292
    %327 = vmatprep.subr.mxu0 0.0
    %328 = vmatpush1.msra.mxu0 %v291
    %329 = vmatprep.subr.mxu0 0.0
    %330 = vmatpush1.msra.mxu0 %v290
    %331 = vmatprep.subr.mxu0 0.0
    %332 = vmatpush1.msra.mxu0 %v289
    %333 = vmatprep.subr.mxu0 0.0
    %334 = vmatpush1.msra.mxu0 %v288
    %335 = vmatprep.subr.mxu0 0.0
    %336 = vmatpush1.msra.mxu0 %v287
    %337 = vmatprep.subr.mxu0 0.0
    %338 = vmatpush1.msra.mxu0 %v286
    %339 = vmatprep.subr.mxu0 0.0
    %340 = vmatpush2.msra.mxu0 0.0
    %341 = vmatprep.subr.mxu0 0.0
    %342 = vmatpush2.msra.mxu0 0.0
    %343 = vmatprep.subr.mxu0 0.0
    %344 = vmatpush2.msra.mxu0 0.0
    %345 = vmatprep.subr.mxu0 0.0
    %346 = vmatpush2.msra.mxu0 0.0
    %347 = vmatprep.subr.mxu0 0.0
    %348 = vmatpush2.msra.mxu0 0.0
    %349 = vmatprep.subr.mxu0 0.0
    %350 = vmatpush2.msra.mxu0 0.0
    %351 = vmatprep.subr.mxu0 0.0
    %352 = vmatpush2.msra.mxu0 0.0
    %353 = vmatprep.subr.mxu0 0.0
    %354 = vmatpush2.msra.mxu0 0.0
    %355 = vmatprep.subr.mxu0 0.0
    %356 = vmatpush2.msra.mxu0 0.0
    %357 = vmatprep.subr.mxu0 0.0
    %358 = vmatpush2.msra.mxu0 0.0
    %359 = vmatprep.subr.mxu0 0.0
    %360 = vmatpush2.msra.mxu0 0.0
    %361 = vmatprep.subr.mxu0 0.0
    %362 = vmatpush2.msra.mxu0 0.0
    %363 = vmatprep.subr.mxu0 0.0
    %364 = vmatpush2.msra.mxu0 0.0
    %365 = vmatprep.subr.mxu0 0.0
    %366 = vmatpush2.msra.mxu0 0.0
    %367 = vmatprep.subr.mxu0 0.0
    %368 = vmatpush2.msra.mxu0 %v303
    %369 = vmatprep.subr.mxu0 0.0
    %370 = vmatpush2.msra.mxu0 %v302
    %371 = vmatprep.mubr.f32.mxu0 %v305
    %372 = vmatmul.mubr.f32.gmra.mxu0 %v284
    %v373 = vpop.f32.mrf.mxu0
    %v374 = vadd.f32 %v73, %v373
    %v375 = vpop.f32.mrf.mxu0
    %376 = vdwg.mxu0
    %v377 = vsel %vm153, %v374, -inf
    %378 = vmax.xlane.f32.xlu0 %v377
    %v379 = vpop.xlane.xlu0 %378
    %v380 = vsub.f32 %v377, %v379
    %v381 = vmul.f32 %v380, 1.442695
    %v382 = vpow.pop %v381
    %383 = vadd.xlane.f32.xlu0 %v382
    %v384 = vpop.xlane.xlu0 %383
    %v385 = vsub.f32 %v374, %v379
    %v386 = vlog2.pop %v384
    %v387 = vmul.f32 %v386, 0.6931472
    %v388 = vsub.f32 %v385, %v387
    %v389 = vsel %vm153, %v388, %v374
    %s390 = scalar_lea.vmem %s5, 16
    %391 = vst [vmem:[%s390] sm:$0xff] %v389
    %392 = vst [vmem:[#allocation2] sm:$0xff] %v389
    %s393 = scalar_lea.vmem %s0, 24
    %v394 = vld [vmem:[%s393] sm:$0xff]
    %395 = vst.msk [vmem:[#allocation2 + $0x8] sm:$0xff] %vm47, %v394
    %v396 = vld [vmem:[#allocation2] sm:$0xff]
    %v397 = vld [vmem:[#allocation2 + $0x8] sm:$0xff]
    %v398 = vld [vmem:[#allocation3] sm:$0xff]
    %v399 = vld [vmem:[#allocation3 + $0x8] sm:$0xff]
    %v400 = vld [vmem:[#allocation3 + $0x10] sm:$0xff]
    %v401 = vld [vmem:[#allocation3 + $0x18] sm:$0xff]
    %v402 = vld [vmem:[#allocation3 + $0x20] sm:$0xff]
    %v403 = vld [vmem:[#allocation3 + $0x28] sm:$0xff]
    %v404 = vld [vmem:[#allocation3 + $0x30] sm:$0xff]
    %v405 = vld [vmem:[#allocation3 + $0x38] sm:$0xff]
    %v406 = vld [vmem:[#allocation3 + $0x40] sm:$0xff]
    %v407 = vld [vmem:[#allocation3 + $0x48] sm:$0xff]
    %v408 = vld [vmem:[#allocation3 + $0x50] sm:$0xff]
    %v409 = vld [vmem:[#allocation3 + $0x58] sm:$0xff]
    %v410 = vld [vmem:[#allocation3 + $0x60] sm:$0xff]
    %v411 = vld [vmem:[#allocation3 + $0x68] sm:$0xff]
    %v412 = vld [vmem:[#allocation3 + $0x70] sm:$0xff]
    %v413 = vld [vmem:[#allocation3 + $0x78] sm:$0xff]
    %v414 = vld [vmem:[#allocation3 + $0x80] sm:$0xff]
    %v415 = vld [vmem:[#allocation3 + $0x88] sm:$0xff]
    %v417 = vsel %vm47, %v397, 0
    %419 = vmatprep.subr.mxu0 0.0
    %420 = vmatpush1.msra.mxu0 %v413
    %421 = vmatprep.subr.mxu0 0.0
    %422 = vmatpush1.msra.mxu0 %v412
    %423 = vmatprep.subr.mxu0 0.0
    %424 = vmatpush1.msra.mxu0 %v411
    %425 = vmatprep.subr.mxu0 0.0
    %426 = vmatpush1.msra.mxu0 %v410
    %427 = vmatprep.subr.mxu0 0.0
    %428 = vmatpush1.msra.mxu0 %v409
    %429 = vmatprep.subr.mxu0 0.0
    %430 = vmatpush1.msra.mxu0 %v408
    %431 = vmatprep.subr.mxu0 0.0
    %432 = vmatpush1.msra.mxu0 %v407
    %433 = vmatprep.subr.mxu0 0.0
    %434 = vmatpush1.msra.mxu0 %v406
    %435 = vmatprep.subr.mxu0 0.0
    %436 = vmatpush1.msra.mxu0 %v405
    %437 = vmatprep.subr.mxu0 0.0
    %438 = vmatpush1.msra.mxu0 %v404
    %439 = vmatprep.subr.mxu0 0.0
    %440 = vmatpush1.msra.mxu0 %v403
    %441 = vmatprep.subr.mxu0 0.0
    %442 = vmatpush1.msra.mxu0 %v402
    %443 = vmatprep.subr.mxu0 0.0
    %444 = vmatpush1.msra.mxu0 %v401
    %445 = vmatprep.subr.mxu0 0.0
    %446 = vmatpush1.msra.mxu0 %v400
    %447 = vmatprep.subr.mxu0 0.0
    %448 = vmatpush1.msra.mxu0 %v399
    %449 = vmatprep.subr.mxu0 0.0
    %450 = vmatpush1.msra.mxu0 %v398
    %451 = vmatprep.subr.mxu0 0.0
    %452 = vmatpush2.msra.mxu0 0.0
    %453 = vmatprep.subr.mxu0 0.0
    %454 = vmatpush2.msra.mxu0 0.0
    %455 = vmatprep.subr.mxu0 0.0
    %456 = vmatpush2.msra.mxu0 0.0
    %457 = vmatprep.subr.mxu0 0.0
    %458 = vmatpush2.msra.mxu0 0.0
    %459 = vmatprep.subr.mxu0 0.0
    %460 = vmatpush2.msra.mxu0 0.0
    %461 = vmatprep.subr.mxu0 0.0
    %462 = vmatpush2.msra.mxu0 0.0
    %463 = vmatprep.subr.mxu0 0.0
    %464 = vmatpush2.msra.mxu0 0.0
    %465 = vmatprep.subr.mxu0 0.0
    %466 = vmatpush2.msra.mxu0 0.0
    %467 = vmatprep.subr.mxu0 0.0
    %468 = vmatpush2.msra.mxu0 0.0
    %469 = vmatprep.subr.mxu0 0.0
    %470 = vmatpush2.msra.mxu0 0.0
    %471 = vmatprep.subr.mxu0 0.0
    %472 = vmatpush2.msra.mxu0 0.0
    %473 = vmatprep.subr.mxu0 0.0
    %474 = vmatpush2.msra.mxu0 0.0
    %475 = vmatprep.subr.mxu0 0.0
    %476 = vmatpush2.msra.mxu0 0.0
    %477 = vmatprep.subr.mxu0 0.0
    %478 = vmatpush2.msra.mxu0 0.0
    %479 = vmatprep.subr.mxu0 0.0
    %480 = vmatpush2.msra.mxu0 %v415
    %481 = vmatprep.subr.mxu0 0.0
    %482 = vmatpush2.msra.mxu0 %v414
    %483 = vmatprep.mubr.f32.mxu0 %v417
    %484 = vmatmul.mubr.f32.gmra.mxu0 %v396
    %v485 = vpop.f32.mrf.mxu0
    %v486 = vadd.f32 %v73, %v485
    %v487 = vpop.f32.mrf.mxu0
    %488 = vdwg.mxu0
    %v489 = vsel %vm153, %v486, -inf
    %490 = vmax.xlane.f32.xlu0 %v489
    %v491 = vpop.xlane.xlu0 %490
    %v492 = vsub.f32 %v489, %v491
    %v493 = vmul.f32 %v492, 1.442695
    %v494 = vpow.pop %v493
    %495 = vadd.xlane.f32.xlu0 %v494
    %v496 = vpop.xlane.xlu0 %495
    %v497 = vsub.f32 %v486, %v491
    %v498 = vlog2.pop %v496
    %v499 = vmul.f32 %v498, 0.6931472
    %v500 = vsub.f32 %v497, %v499
    %v501 = vsel %vm153, %v500, %v486
    %s502 = scalar_lea.vmem %s5, 24
    %503 = vst [vmem:[%s502] sm:$0xff] %v501
    %504 = vst [vmem:[#allocation2] sm:$0xff] %v501
    %s505 = scalar_lea.vmem %s0, 32
    %v506 = vld [vmem:[%s505] sm:$0xff]
    %507 = vst.msk [vmem:[#allocation2 + $0x8] sm:$0xff] %vm47, %v506
    %v508 = vld [vmem:[#allocation2] sm:$0xff]
    %v509 = vld [vmem:[#allocation2 + $0x8] sm:$0xff]
    %v510 = vld [vmem:[#allocation3] sm:$0xff]
    %v511 = vld [vmem:[#allocation3 + $0x8] sm:$0xff]
    %v512 = vld [vmem:[#allocation3 + $0x10] sm:$0xff]
    %v513 = vld [vmem:[#allocation3 + $0x18] sm:$0xff]
    %v514 = vld [vmem:[#allocation3 + $0x20] sm:$0xff]
    %v515 = vld [vmem:[#allocation3 + $0x28] sm:$0xff]
    %v516 = vld [vmem:[#allocation3 + $0x30] sm:$0xff]
    %v517 = vld [vmem:[#allocation3 + $0x38] sm:$0xff]
    %v518 = vld [vmem:[#allocation3 + $0x40] sm:$0xff]
    %v519 = vld [vmem:[#allocation3 + $0x48] sm:$0xff]
    %v520 = vld [vmem:[#allocation3 + $0x50] sm:$0xff]
    %v521 = vld [vmem:[#allocation3 + $0x58] sm:$0xff]
    %v522 = vld [vmem:[#allocation3 + $0x60] sm:$0xff]
    %v523 = vld [vmem:[#allocation3 + $0x68] sm:$0xff]
    %v524 = vld [vmem:[#allocation3 + $0x70] sm:$0xff]
    %v525 = vld [vmem:[#allocation3 + $0x78] sm:$0xff]
    %v526 = vld [vmem:[#allocation3 + $0x80] sm:$0xff]
    %v527 = vld [vmem:[#allocation3 + $0x88] sm:$0xff]
    %v529 = vsel %vm47, %v509, 0
    %531 = vmatprep.subr.mxu0 0.0
    %532 = vmatpush1.msra.mxu0 %v525
    %533 = vmatprep.subr.mxu0 0.0
    %534 = vmatpush1.msra.mxu0 %v524
    %535 = vmatprep.subr.mxu0 0.0
    %536 = vmatpush1.msra.mxu0 %v523
    %537 = vmatprep.subr.mxu0 0.0
    %538 = vmatpush1.msra.mxu0 %v522
    %539 = vmatprep.subr.mxu0 0.0
    %540 = vmatpush1.msra.mxu0 %v521
    %541 = vmatprep.subr.mxu0 0.0
    %542 = vmatpush1.msra.mxu0 %v520
    %543 = vmatprep.subr.mxu0 0.0
    %544 = vmatpush1.msra.mxu0 %v519
    %545 = vmatprep.subr.mxu0 0.0
    %546 = vmatpush1.msra.mxu0 %v518
    %547 = vmatprep.subr.mxu0 0.0
    %548 = vmatpush1.msra.mxu0 %v517
    %549 = vmatprep.subr.mxu0 0.0
    %550 = vmatpush1.msra.mxu0 %v516
    %551 = vmatprep.subr.mxu0 0.0
    %552 = vmatpush1.msra.mxu0 %v515
    %553 = vmatprep.subr.mxu0 0.0
    %554 = vmatpush1.msra.mxu0 %v514
    %555 = vmatprep.subr.mxu0 0.0
    %556 = vmatpush1.msra.mxu0 %v513
    %557 = vmatprep.subr.mxu0 0.0
    %558 = vmatpush1.msra.mxu0 %v512
    %559 = vmatprep.subr.mxu0 0.0
    %560 = vmatpush1.msra.mxu0 %v511
    %561 = vmatprep.subr.mxu0 0.0
    %562 = vmatpush1.msra.mxu0 %v510
    %563 = vmatprep.subr.mxu0 0.0
    %564 = vmatpush2.msra.mxu0 0.0
    %565 = vmatprep.subr.mxu0 0.0
    %566 = vmatpush2.msra.mxu0 0.0
    %567 = vmatprep.subr.mxu0 0.0
    %568 = vmatpush2.msra.mxu0 0.0
    %569 = vmatprep.subr.mxu0 0.0
    %570 = vmatpush2.msra.mxu0 0.0
    %571 = vmatprep.subr.mxu0 0.0
    %572 = vmatpush2.msra.mxu0 0.0
    %573 = vmatprep.subr.mxu0 0.0
    %574 = vmatpush2.msra.mxu0 0.0
    %575 = vmatprep.subr.mxu0 0.0
    %576 = vmatpush2.msra.mxu0 0.0
    %577 = vmatprep.subr.mxu0 0.0
    %578 = vmatpush2.msra.mxu0 0.0
    %579 = vmatprep.subr.mxu0 0.0
    %580 = vmatpush2.msra.mxu0 0.0
    %581 = vmatprep.subr.mxu0 0.0
    %582 = vmatpush2.msra.mxu0 0.0
    %583 = vmatprep.subr.mxu0 0.0
    %584 = vmatpush2.msra.mxu0 0.0
    %585 = vmatprep.subr.mxu0 0.0
    %586 = vmatpush2.msra.mxu0 0.0
    %587 = vmatprep.subr.mxu0 0.0
    %588 = vmatpush2.msra.mxu0 0.0
    %589 = vmatprep.subr.mxu0 0.0
    %590 = vmatpush2.msra.mxu0 0.0
    %591 = vmatprep.subr.mxu0 0.0
    %592 = vmatpush2.msra.mxu0 %v527
    %593 = vmatprep.subr.mxu0 0.0
    %594 = vmatpush2.msra.mxu0 %v526
    %595 = vmatprep.mubr.f32.mxu0 %v529
    %596 = vmatmul.mubr.f32.gmra.mxu0 %v508
    %v597 = vpop.f32.mrf.mxu0
    %v598 = vadd.f32 %v73, %v597
    %v599 = vpop.f32.mrf.mxu0
    %600 = vdwg.mxu0
    %v601 = vsel %vm153, %v598, -inf
    %602 = vmax.xlane.f32.xlu0 %v601
    %v603 = vpop.xlane.xlu0 %602
    %v604 = vsub.f32 %v601, %v603
    %v605 = vmul.f32 %v604, 1.442695
    %v606 = vpow.pop %v605
    %607 = vadd.xlane.f32.xlu0 %v606
    %v608 = vpop.xlane.xlu0 %607
    %v609 = vsub.f32 %v598, %v603
    %v610 = vlog2.pop %v608
    %v611 = vmul.f32 %v610, 0.6931472
    %v612 = vsub.f32 %v609, %v611
    %v613 = vsel %vm153, %v612, %v598
    %s614 = scalar_lea.vmem %s5, 32
    %615 = vst [vmem:[%s614] sm:$0xff] %v613
    %616 = vst [vmem:[#allocation2] sm:$0xff] %v613
    %s617 = scalar_lea.vmem %s0, 40
    %v618 = vld [vmem:[%s617] sm:$0xff]
    %619 = vst.msk [vmem:[#allocation2 + $0x8] sm:$0xff] %vm47, %v618
    %v620 = vld [vmem:[#allocation2] sm:$0xff]
    %v621 = vld [vmem:[#allocation2 + $0x8] sm:$0xff]
    %v622 = vld [vmem:[#allocation3] sm:$0xff]
    %v623 = vld [vmem:[#allocation3 + $0x8] sm:$0xff]
    %v624 = vld [vmem:[#allocation3 + $0x10] sm:$0xff]
    %v625 = vld [vmem:[#allocation3 + $0x18] sm:$0xff]
    %v626 = vld [vmem:[#allocation3 + $0x20] sm:$0xff]
    %v627 = vld [vmem:[#allocation3 + $0x28] sm:$0xff]
    %v628 = vld [vmem:[#allocation3 + $0x30] sm:$0xff]
    %v629 = vld [vmem:[#allocation3 + $0x38] sm:$0xff]
    %v630 = vld [vmem:[#allocation3 + $0x40] sm:$0xff]
    %v631 = vld [vmem:[#allocation3 + $0x48] sm:$0xff]
    %v632 = vld [vmem:[#allocation3 + $0x50] sm:$0xff]
    %v633 = vld [vmem:[#allocation3 + $0x58] sm:$0xff]
    %v634 = vld [vmem:[#allocation3 + $0x60] sm:$0xff]
    %v635 = vld [vmem:[#allocation3 + $0x68] sm:$0xff]
    %v636 = vld [vmem:[#allocation3 + $0x70] sm:$0xff]
    %v637 = vld [vmem:[#allocation3 + $0x78] sm:$0xff]
    %v638 = vld [vmem:[#allocation3 + $0x80] sm:$0xff]
    %v639 = vld [vmem:[#allocation3 + $0x88] sm:$0xff]
    %v641 = vsel %vm47, %v621, 0
    %643 = vmatprep.subr.mxu0 0.0
    %644 = vmatpush1.msra.mxu0 %v637
    %645 = vmatprep.subr.mxu0 0.0
    %646 = vmatpush1.msra.mxu0 %v636
    %647 = vmatprep.subr.mxu0 0.0
    %648 = vmatpush1.msra.mxu0 %v635
    %649 = vmatprep.subr.mxu0 0.0
    %650 = vmatpush1.msra.mxu0 %v634
    %651 = vmatprep.subr.mxu0 0.0
    %652 = vmatpush1.msra.mxu0 %v633
    %653 = vmatprep.subr.mxu0 0.0
    %654 = vmatpush1.msra.mxu0 %v632
    %655 = vmatprep.subr.mxu0 0.0
    %656 = vmatpush1.msra.mxu0 %v631
    %657 = vmatprep.subr.mxu0 0.0
    %658 = vmatpush1.msra.mxu0 %v630
    %659 = vmatprep.subr.mxu0 0.0
    %660 = vmatpush1.msra.mxu0 %v629
    %661 = vmatprep.subr.mxu0 0.0
    %662 = vmatpush1.msra.mxu0 %v628
    %663 = vmatprep.subr.mxu0 0.0
    %664 = vmatpush1.msra.mxu0 %v627
    %665 = vmatprep.subr.mxu0 0.0
    %666 = vmatpush1.msra.mxu0 %v626
    %667 = vmatprep.subr.mxu0 0.0
    %668 = vmatpush1.msra.mxu0 %v625
    %669 = vmatprep.subr.mxu0 0.0
    %670 = vmatpush1.msra.mxu0 %v624
    %671 = vmatprep.subr.mxu0 0.0
    %672 = vmatpush1.msra.mxu0 %v623
    %673 = vmatprep.subr.mxu0 0.0
    %674 = vmatpush1.msra.mxu0 %v622
    %675 = vmatprep.subr.mxu0 0.0
    %676 = vmatpush2.msra.mxu0 0.0
    %677 = vmatprep.subr.mxu0 0.0
    %678 = vmatpush2.msra.mxu0 0.0
    %679 = vmatprep.subr.mxu0 0.0
    %680 = vmatpush2.msra.mxu0 0.0
    %681 = vmatprep.subr.mxu0 0.0
    %682 = vmatpush2.msra.mxu0 0.0
    %683 = vmatprep.subr.mxu0 0.0
    %684 = vmatpush2.msra.mxu0 0.0
    %685 = vmatprep.subr.mxu0 0.0
    %686 = vmatpush2.msra.mxu0 0.0
    %687 = vmatprep.subr.mxu0 0.0
    %688 = vmatpush2.msra.mxu0 0.0
    %689 = vmatprep.subr.mxu0 0.0
    %690 = vmatpush2.msra.mxu0 0.0
    %691 = vmatprep.subr.mxu0 0.0
    %692 = vmatpush2.msra.mxu0 0.0
    %693 = vmatprep.subr.mxu0 0.0
    %694 = vmatpush2.msra.mxu0 0.0
    %695 = vmatprep.subr.mxu0 0.0
    %696 = vmatpush2.msra.mxu0 0.0
    %697 = vmatprep.subr.mxu0 0.0
    %698 = vmatpush2.msra.mxu0 0.0
    %699 = vmatprep.subr.mxu0 0.0
    %700 = vmatpush2.msra.mxu0 0.0
    %701 = vmatprep.subr.mxu0 0.0
    %702 = vmatpush2.msra.mxu0 0.0
    %703 = vmatprep.subr.mxu0 0.0
    %704 = vmatpush2.msra.mxu0 %v639
    %705 = vmatprep.subr.mxu0 0.0
    %706 = vmatpush2.msra.mxu0 %v638
    %707 = vmatprep.mubr.f32.mxu0 %v641
    %708 = vmatmul.mubr.f32.gmra.mxu0 %v620
    %v709 = vpop.f32.mrf.mxu0
    %v710 = vadd.f32 %v73, %v709
    %v711 = vpop.f32.mrf.mxu0
    %712 = vdwg.mxu0
    %v713 = vsel %vm153, %v710, -inf
    %714 = vmax.xlane.f32.xlu0 %v713
    %v715 = vpop.xlane.xlu0 %714
    %v716 = vsub.f32 %v713, %v715
    %v717 = vmul.f32 %v716, 1.442695
    %v718 = vpow.pop %v717
    %719 = vadd.xlane.f32.xlu0 %v718
    %v720 = vpop.xlane.xlu0 %719
    %v721 = vsub.f32 %v710, %v715
    %v722 = vlog2.pop %v720
    %v723 = vmul.f32 %v722, 0.6931472
    %v724 = vsub.f32 %v721, %v723
    %v725 = vsel %vm153, %v724, %v710
    %s726 = scalar_lea.vmem %s5, 40
    %727 = vst [vmem:[%s726] sm:$0xff] %v725
    %728 = vst [vmem:[#allocation2] sm:$0xff] %v725
    %s729 = scalar_lea.vmem %s0, 48
    %v730 = vld [vmem:[%s729] sm:$0xff]
    %731 = vst.msk [vmem:[#allocation2 + $0x8] sm:$0xff] %vm47, %v730
    %v732 = vld [vmem:[#allocation2] sm:$0xff]
    %v733 = vld [vmem:[#allocation2 + $0x8] sm:$0xff]
    %v734 = vld [vmem:[#allocation3] sm:$0xff]
    %v735 = vld [vmem:[#allocation3 + $0x8] sm:$0xff]
    %v736 = vld [vmem:[#allocation3 + $0x10] sm:$0xff]
    %v737 = vld [vmem:[#allocation3 + $0x18] sm:$0xff]
    %v738 = vld [vmem:[#allocation3 + $0x20] sm:$0xff]
    %v739 = vld [vmem:[#allocation3 + $0x28] sm:$0xff]
    %v740 = vld [vmem:[#allocation3 + $0x30] sm:$0xff]
    %v741 = vld [vmem:[#allocation3 + $0x38] sm:$0xff]
    %v742 = vld [vmem:[#allocation3 + $0x40] sm:$0xff]
    %v743 = vld [vmem:[#allocation3 + $0x48] sm:$0xff]
    %v744 = vld [vmem:[#allocation3 + $0x50] sm:$0xff]
    %v745 = vld [vmem:[#allocation3 + $0x58] sm:$0xff]
    %v746 = vld [vmem:[#allocation3 + $0x60] sm:$0xff]
    %v747 = vld [vmem:[#allocation3 + $0x68] sm:$0xff]
    %v748 = vld [vmem:[#allocation3 + $0x70] sm:$0xff]
    %v749 = vld [vmem:[#allocation3 + $0x78] sm:$0xff]
    %v750 = vld [vmem:[#allocation3 + $0x80] sm:$0xff]
    %v751 = vld [vmem:[#allocation3 + $0x88] sm:$0xff]
    %v753 = vsel %vm47, %v733, 0
    %755 = vmatprep.subr.mxu0 0.0
    %756 = vmatpush1.msra.mxu0 %v749
    %757 = vmatprep.subr.mxu0 0.0
    %758 = vmatpush1.msra.mxu0 %v748
    %759 = vmatprep.subr.mxu0 0.0
    %760 = vmatpush1.msra.mxu0 %v747
    %761 = vmatprep.subr.mxu0 0.0
    %762 = vmatpush1.msra.mxu0 %v746
    %763 = vmatprep.subr.mxu0 0.0
    %764 = vmatpush1.msra.mxu0 %v745
    %765 = vmatprep.subr.mxu0 0.0
    %766 = vmatpush1.msra.mxu0 %v744
    %767 = vmatprep.subr.mxu0 0.0
    %768 = vmatpush1.msra.mxu0 %v743
    %769 = vmatprep.subr.mxu0 0.0
    %770 = vmatpush1.msra.mxu0 %v742
    %771 = vmatprep.subr.mxu0 0.0
    %772 = vmatpush1.msra.mxu0 %v741
    %773 = vmatprep.subr.mxu0 0.0
    %774 = vmatpush1.msra.mxu0 %v740
    %775 = vmatprep.subr.mxu0 0.0
    %776 = vmatpush1.msra.mxu0 %v739
    %777 = vmatprep.subr.mxu0 0.0
    %778 = vmatpush1.msra.mxu0 %v738
    %779 = vmatprep.subr.mxu0 0.0
    %780 = vmatpush1.msra.mxu0 %v737
    %781 = vmatprep.subr.mxu0 0.0
    %782 = vmatpush1.msra.mxu0 %v736
    %783 = vmatprep.subr.mxu0 0.0
    %784 = vmatpush1.msra.mxu0 %v735
    %785 = vmatprep.subr.mxu0 0.0
    %786 = vmatpush1.msra.mxu0 %v734
    %787 = vmatprep.subr.mxu0 0.0
    %788 = vmatpush2.msra.mxu0 0.0
    %789 = vmatprep.subr.mxu0 0.0
    %790 = vmatpush2.msra.mxu0 0.0
    %791 = vmatprep.subr.mxu0 0.0
    %792 = vmatpush2.msra.mxu0 0.0
    %793 = vmatprep.subr.mxu0 0.0
    %794 = vmatpush2.msra.mxu0 0.0
    %795 = vmatprep.subr.mxu0 0.0
    %796 = vmatpush2.msra.mxu0 0.0
    %797 = vmatprep.subr.mxu0 0.0
    %798 = vmatpush2.msra.mxu0 0.0
    %799 = vmatprep.subr.mxu0 0.0
    %800 = vmatpush2.msra.mxu0 0.0
    %801 = vmatprep.subr.mxu0 0.0
    %802 = vmatpush2.msra.mxu0 0.0
    %803 = vmatprep.subr.mxu0 0.0
    %804 = vmatpush2.msra.mxu0 0.0
    %805 = vmatprep.subr.mxu0 0.0
    %806 = vmatpush2.msra.mxu0 0.0
    %807 = vmatprep.subr.mxu0 0.0
    %808 = vmatpush2.msra.mxu0 0.0
    %809 = vmatprep.subr.mxu0 0.0
    %810 = vmatpush2.msra.mxu0 0.0
    %811 = vmatprep.subr.mxu0 0.0
    %812 = vmatpush2.msra.mxu0 0.0
    %813 = vmatprep.subr.mxu0 0.0
    %814 = vmatpush2.msra.mxu0 0.0
    %815 = vmatprep.subr.mxu0 0.0
    %816 = vmatpush2.msra.mxu0 %v751
    %817 = vmatprep.subr.mxu0 0.0
    %818 = vmatpush2.msra.mxu0 %v750
    %819 = vmatprep.mubr.f32.mxu0 %v753
    %820 = vmatmul.mubr.f32.gmra.mxu0 %v732
    %v821 = vpop.f32.mrf.mxu0
    %v822 = vadd.f32 %v73, %v821
    %v823 = vpop.f32.mrf.mxu0
    %824 = vdwg.mxu0
    %v825 = vsel %vm153, %v822, -inf
    %826 = vmax.xlane.f32.xlu0 %v825
    %v827 = vpop.xlane.xlu0 %826
    %v828 = vsub.f32 %v825, %v827
    %v829 = vmul.f32 %v828, 1.442695
    %v830 = vpow.pop %v829
    %831 = vadd.xlane.f32.xlu0 %v830
    %v832 = vpop.xlane.xlu0 %831
    %v833 = vsub.f32 %v822, %v827
    %v834 = vlog2.pop %v832
    %v835 = vmul.f32 %v834, 0.6931472
    %v836 = vsub.f32 %v833, %v835
    %v837 = vsel %vm153, %v836, %v822
    %s838 = scalar_lea.vmem %s5, 48
    %839 = vst [vmem:[%s838] sm:$0xff] %v837
    %840 = vst [vmem:[#allocation2] sm:$0xff] %v837
    %s841 = scalar_lea.vmem %s0, 56
    %v842 = vld [vmem:[%s841] sm:$0xff]
    %843 = vst.msk [vmem:[#allocation2 + $0x8] sm:$0xff] %vm47, %v842
    %v844 = vld [vmem:[#allocation2] sm:$0xff]
    %v845 = vld [vmem:[#allocation2 + $0x8] sm:$0xff]
    %v846 = vld [vmem:[#allocation3] sm:$0xff]
    %v847 = vld [vmem:[#allocation3 + $0x8] sm:$0xff]
    %v848 = vld [vmem:[#allocation3 + $0x10] sm:$0xff]
    %v849 = vld [vmem:[#allocation3 + $0x18] sm:$0xff]
    %v850 = vld [vmem:[#allocation3 + $0x20] sm:$0xff]
    %v851 = vld [vmem:[#allocation3 + $0x28] sm:$0xff]
    %v852 = vld [vmem:[#allocation3 + $0x30] sm:$0xff]
    %v853 = vld [vmem:[#allocation3 + $0x38] sm:$0xff]
    %v854 = vld [vmem:[#allocation3 + $0x40] sm:$0xff]
    %v855 = vld [vmem:[#allocation3 + $0x48] sm:$0xff]
    %v856 = vld [vmem:[#allocation3 + $0x50] sm:$0xff]
    %v857 = vld [vmem:[#allocation3 + $0x58] sm:$0xff]
    %v858 = vld [vmem:[#allocation3 + $0x60] sm:$0xff]
    %v859 = vld [vmem:[#allocation3 + $0x68] sm:$0xff]
    %v860 = vld [vmem:[#allocation3 + $0x70] sm:$0xff]
    %v861 = vld [vmem:[#allocation3 + $0x78] sm:$0xff]
    %v862 = vld [vmem:[#allocation3 + $0x80] sm:$0xff]
    %v863 = vld [vmem:[#allocation3 + $0x88] sm:$0xff]
    %v865 = vsel %vm47, %v845, 0
    %867 = vmatprep.subr.mxu0 0.0
    %868 = vmatpush1.msra.mxu0 %v861
    %869 = vmatprep.subr.mxu0 0.0
    %870 = vmatpush1.msra.mxu0 %v860
    %871 = vmatprep.subr.mxu0 0.0
    %872 = vmatpush1.msra.mxu0 %v859
    %873 = vmatprep.subr.mxu0 0.0
    %874 = vmatpush1.msra.mxu0 %v858
    %875 = vmatprep.subr.mxu0 0.0
    %876 = vmatpush1.msra.mxu0 %v857
    %877 = vmatprep.subr.mxu0 0.0
    %878 = vmatpush1.msra.mxu0 %v856
    %879 = vmatprep.subr.mxu0 0.0
    %880 = vmatpush1.msra.mxu0 %v855
    %881 = vmatprep.subr.mxu0 0.0
    %882 = vmatpush1.msra.mxu0 %v854
    %883 = vmatprep.subr.mxu0 0.0
    %884 = vmatpush1.msra.mxu0 %v853
    %885 = vmatprep.subr.mxu0 0.0
    %886 = vmatpush1.msra.mxu0 %v852
    %887 = vmatprep.subr.mxu0 0.0
    %888 = vmatpush1.msra.mxu0 %v851
    %889 = vmatprep.subr.mxu0 0.0
    %890 = vmatpush1.msra.mxu0 %v850
    %891 = vmatprep.subr.mxu0 0.0
    %892 = vmatpush1.msra.mxu0 %v849
    %893 = vmatprep.subr.mxu0 0.0
    %894 = vmatpush1.msra.mxu0 %v848
    %895 = vmatprep.subr.mxu0 0.0
    %896 = vmatpush1.msra.mxu0 %v847
    %897 = vmatprep.subr.mxu0 0.0
    %898 = vmatpush1.msra.mxu0 %v846
    %899 = vmatprep.subr.mxu0 0.0
    %900 = vmatpush2.msra.mxu0 0.0
    %901 = vmatprep.subr.mxu0 0.0
    %902 = vmatpush2.msra.mxu0 0.0
    %903 = vmatprep.subr.mxu0 0.0
    %904 = vmatpush2.msra.mxu0 0.0
    %905 = vmatprep.subr.mxu0 0.0
    %906 = vmatpush2.msra.mxu0 0.0
    %907 = vmatprep.subr.mxu0 0.0
    %908 = vmatpush2.msra.mxu0 0.0
    %909 = vmatprep.subr.mxu0 0.0
    %910 = vmatpush2.msra.mxu0 0.0
    %911 = vmatprep.subr.mxu0 0.0
    %912 = vmatpush2.msra.mxu0 0.0
    %913 = vmatprep.subr.mxu0 0.0
    %914 = vmatpush2.msra.mxu0 0.0
    %915 = vmatprep.subr.mxu0 0.0
    %916 = vmatpush2.msra.mxu0 0.0
    %917 = vmatprep.subr.mxu0 0.0
    %918 = vmatpush2.msra.mxu0 0.0
    %919 = vmatprep.subr.mxu0 0.0
    %920 = vmatpush2.msra.mxu0 0.0
    %921 = vmatprep.subr.mxu0 0.0
    %922 = vmatpush2.msra.mxu0 0.0
    %923 = vmatprep.subr.mxu0 0.0
    %924 = vmatpush2.msra.mxu0 0.0
    %925 = vmatprep.subr.mxu0 0.0
    %926 = vmatpush2.msra.mxu0 0.0
    %927 = vmatprep.subr.mxu0 0.0
    %928 = vmatpush2.msra.mxu0 %v863
    %929 = vmatprep.subr.mxu0 0.0
    %930 = vmatpush2.msra.mxu0 %v862
    %931 = vmatprep.mubr.f32.mxu0 %v865
    %932 = vmatmul.mubr.f32.gmra.mxu0 %v844
    %v933 = vpop.f32.mrf.mxu0
    %v934 = vadd.f32 %v73, %v933
    %v935 = vpop.f32.mrf.mxu0
    %936 = vdwg.mxu0
    %v937 = vsel %vm153, %v934, -inf
    %938 = vmax.xlane.f32.xlu0 %v937
    %v939 = vpop.xlane.xlu0 %938
    %v940 = vsub.f32 %v937, %v939
    %v941 = vmul.f32 %v940, 1.442695
    %v942 = vpow.pop %v941
    %943 = vadd.xlane.f32.xlu0 %v942
    %v944 = vpop.xlane.xlu0 %943
    %v945 = vsub.f32 %v934, %v939
    %v946 = vlog2.pop %v944
    %v947 = vmul.f32 %v946, 0.6931472
    %v948 = vsub.f32 %v945, %v947
    %v949 = vsel %vm153, %v948, %v934
    %s950 = scalar_lea.vmem %s5, 56
    %951 = vst [vmem:[%s950] sm:$0xff] %v949
    %952 = vst [vmem:[#allocation2] sm:$0xff] %v949
    // Predicated region
    $region30: #{rnn_agent_rollout.1} parent=1 // pred_check
      _
    $region31: #{rnn_agent_rollout.1} parent=1 // pred_check_branch
      %954 = sbr.rel (0) target = $region33
    $region32: #{rnn_agent_rollout.1} parent=1 // pred_region
      _
    $region33: #{rnn_agent_rollout.1} parent=1 // pred_fallthru
      _
    // Predicated region
    $region34: #{rnn_agent_rollout.1} parent=1 // pred_check
      _
    $region35: #{rnn_agent_rollout.1} parent=1 // pred_check_branch
      %956 = sbr.rel (0) target = $region37
    $region36: #{rnn_agent_rollout.1} parent=1 // pred_region
      _
    $region37: #{rnn_agent_rollout.1} parent=1 // pred_fallthru
      _
    %957 = vsyncpa [#allocation4], 1

</llo_original>
